<compile_context>
chip_gen: v7x
topology: tpu7x:2x2x1
jax: 0.10.0
libtpu: 0.0.40
codegen_flags: <defaults>
</compile_context>

<pallas_src>
import numpy as np
import jax
import jax.numpy as jnp
from jax.experimental import pallas as pl
from jax.experimental.pallas import tpu as pltpu

# ---------------- small, deterministic configuration -------------------------
EMBED_DIM    = 8          # embedding_dim
KERNEL_DIM   = 8          # kernel_dim (conv out channels per kernel size)
KERNEL_SIZES = (3, 4, 5)  # kernel_sizes
INPUT_SIZE   = 1          # LSTM input_size (global `input_size = 1` in script)
HIDDEN_SIZE  = 16         # hidden_size (undefined global in script -> small)
NUM_LAYERS   = 1          # num_layers  (undefined global in script -> 1)
OUTPUT_SIZE  = 32         # output_size (num_classes=1916 in script; small here)
OUT_PAD      = 128        # lane-dense padded FC head (multiple of 128)
BATCH        = 2
SEQ1         = 16         # sequence length for the CNN branch
SEQ2         = 8          # time steps for the LSTM branch

KMAX   = max(KERNEL_SIZES)                              # 5
NCONV  = len(KERNEL_SIZES)                              # 3
C3     = NCONV * KERNEL_DIM                             # 24 fused conv channels
LPAD   = SEQ1                                           # fused conv positions
PATCH_W = KMAX * EMBED_DIM                              # 40 im2col patch width
FC_IN  = C3 + HIDDEN_SIZE                               # 40

# --- narrow packed buffer (rows x 128 lanes); all row offsets 8-aligned ------
NB_WCONV_ROW = 0                                        # rows  0:40, lanes 0:24
NB_WHH_ROW   = PATCH_W                                  # rows 40:56, lanes 0:64
NB_CONVB_ROW = NB_WHH_ROW + HIDDEN_SIZE                 # 56 : fused conv bias
NB_WIH_ROW   = NB_CONVB_ROW + 8                         # 64 : LSTM w_ih (1,4H)
NB_BL_ROW    = NB_WIH_ROW + 8                           # 72 : b_ih + b_hh (1,4H)
NB_ROWS      = NB_BL_ROW + 8                            # 80
NB_LANES     = 128

# --- wide (OUT_PAD lanes) buffer: FC head only --------------------------------
WFC_B_ROW = FC_IN                                       # 40 : padded FC bias row
WFC_ROWS  = 48


def make_kernel(kernel_sizes, kernel_dim, hidden_size, embed_dim, seq1):
    C, H, E, S = kernel_dim, hidden_size, embed_dim, seq1
    H4 = 4 * H
    kmax = max(kernel_sizes)

    def kernel(patches_ref, x2_ref, nbuf_ref, wfc_ref, out_ref):
        # ---------------- CNN branch: ONE fused im2col matmul ----------------
        patches = patches_ref[...]                        # (B*LPAD, KMAX*E)
        Bc = patches.shape[0] // LPAD
        w_conv = nbuf_ref[NB_WCONV_ROW:NB_WCONV_ROW + kmax * E, :C3]   # (40, 24)
        b_conv = nbuf_ref[NB_CONVB_ROW:NB_CONVB_ROW + 1, :C3]         # (1, 24)
        conv = jnp.maximum(
            jnp.dot(patches, w_conv, preferred_element_type=jnp.float32) + b_conv,
            0.0)                                          # bias + ReLU, one pass
        conv = conv.reshape(Bc, LPAD, C3)                 # 8-aligned sublane split

        # Mask output positions whose window ran into the zero padding
        # (pos >= S-K+1 for each branch).  After ReLU every valid value is
        # >= 0, so masking to 0 keeps the global max exact.
        pos  = jax.lax.broadcasted_iota(jnp.int32, (1, LPAD, C3), 1)
        lane = jax.lax.broadcasted_iota(jnp.int32, (1, LPAD, C3), 2)
        lims = jnp.zeros((1, LPAD, C3), jnp.int32)
        for j, K in enumerate(kernel_sizes):
            lims = jnp.where((lane >= j * C) & (lane < (j + 1) * C),
                             S - K + 1, lims)
        conv = jnp.where(pos < lims, conv, 0.0)
        pooled = jnp.max(conv, axis=1)                    # (B, 3C) single max-pool

        # ---------------- LSTM branch: MXU-free serial recurrence ------------
        x2 = x2_ref[...]                                  # (T, B, 1) time-major
        T = x2.shape[0]
        w_ih = nbuf_ref[NB_WIH_ROW:NB_WIH_ROW + 1, :H4]   # (1, 4H)
        b_l  = nbuf_ref[NB_BL_ROW:NB_BL_ROW + 1, :H4]     # (1, 4H) = b_ih + b_hh
        gx = x2 * w_ih + b_l                              # (T, B, 4H) input proj

        w_hh = nbuf_ref[NB_WHH_ROW:NB_WHH_ROW + H, :H4]   # (H, 4H)
        # hoist the sublane-broadcast rows once (JAX does not CSE broadcasts)
        whh_rows = [jnp.broadcast_to(w_hh[k:k + 1, :], (Bc, H4)) for k in range(H)]

        h = jnp.zeros((Bc, H), jnp.float32)
        c = jnp.zeros((Bc, H), jnp.float32)
        for t in range(T):                                # static unroll (T=8)
            # h @ w_hh as H=16 VPU broadcast-FMAs, tree-accumulated: keeps the
            # serially-dependent recurrent matvec off the MXU (no systolic
            # fill / result-FIFO pop latency per step on v5e/v6e; also fine
            # on v7x).
            terms = [h[:, k:k + 1] * whh_rows[k] for k in range(H)]
            while len(terms) > 1:
                terms = [terms[i] + terms[i + 1] for i in range(0, len(terms), 2)]
            g = gx[t] + terms[0]                          # (B, 4H)
            # gate columns pre-permuted to [i|f|o||g]; 3 EUP pushes per step
            sg = jax.nn.sigmoid(g[:, :3 * H])             # i | f | o  (1 push)
            gt = jnp.tanh(g[:, 3 * H:])                   # g          (1 push)
            c = sg[:, H:2 * H] * c + sg[:, :H] * gt
            h = sg[:, 2 * H:3 * H] * jnp.tanh(c)          # tanh(c)    (1 push)

        # ---------------- FC head: 2 MXU dots, lane-dense log_softmax --------
        b_fc = wfc_ref[WFC_B_ROW:WFC_B_ROW + 1, :]        # (1, OUT_PAD), pad=-1e30
        logits = jnp.dot(pooled, wfc_ref[:C3, :],
                         preferred_element_type=jnp.float32)
        logits = logits + jnp.dot(h, wfc_ref[C3:C3 + H, :],
                                  preferred_element_type=jnp.float32)
        logits = logits + b_fc                            # pad cols -> -1e30

        m = jnp.max(logits, axis=1, keepdims=True)
        lse = m + jnp.log(jnp.sum(jnp.exp(logits - m), axis=1, keepdims=True))
        out_ref[...] = logits - lse

    return kernel


def _forward_impl(x1, x2, nbuf, wfc):
    B = x1.shape[0]
    # Wrapper-side im2col (layout plumbing, a few KB of f32): pad S by KMAX-1
    # so every kernel size has LPAD=S output positions, then lay the KMAX taps
    # out contiguously in lanes.  This removes the in-kernel lane concat and
    # the unaligned (B*L, K*E) reshape relayouts, and gives the fused conv
    # matmul a sublane-aligned (B*LPAD = 32)-row LHS.
    x1p = jnp.pad(x1, ((0, 0), (0, KMAX - 1), (0, 0)))            # (B, S+4, E)
    patches = jnp.concatenate([x1p[:, k:k + LPAD, :] for k in range(KMAX)],
                              axis=-1)                            # (B, LPAD, 40)
    patches = patches.reshape(B * LPAD, PATCH_W)                  # (32, 40)
    x2_tm = jnp.transpose(x2, (1, 0, 2))                          # (T, B, 1)

    kernel = make_kernel(KERNEL_SIZES, KERNEL_DIM, HIDDEN_SIZE, EMBED_DIM, SEQ1)
    vmem = pltpu.MemorySpace.VMEM
    out_pad = pl.pallas_call(
        kernel,
        out_shape=jax.ShapeDtypeStruct((B, OUT_PAD), jnp.float32),
        in_specs=[pl.BlockSpec(memory_space=vmem)] * 4,
        out_specs=pl.BlockSpec(memory_space=vmem),
        # NOTE(v7x): at B=2 a grid would only add per-step overhead; when B
        # grows (>= ~16) add grid=(B//tb,) + CompilerParams(
        # dimension_semantics=("parallel",)) so both TensorCores get work.
    )(patches, x2_tm, nbuf, wfc)
    return out_pad[:, :OUTPUT_SIZE]


cnn_lstm_forward = jax.jit(_forward_impl)


# ---------------- parameter packing (done once, outside the kernel) ----------
def pack_params(params):
    H, C, E = HIDDEN_SIZE, KERNEL_DIM, EMBED_DIM
    # permute LSTM gate columns (i, f, g, o) -> (i, f, o, g)
    perm = np.concatenate([np.arange(0, H), np.arange(H, 2 * H),
                           np.arange(3 * H, 4 * H), np.arange(2 * H, 3 * H)])

    # narrow buffer: fused conv weights + bias, w_hh, w_ih, b_lstm
    nbuf = jnp.zeros((NB_ROWS, NB_LANES), jnp.float32)
    for j, K in enumerate(KERNEL_SIZES):
        w_flat = params[f"conv{K}_w"].reshape(K * E, C)           # (K*E, C)
        nbuf = nbuf.at[NB_WCONV_ROW:NB_WCONV_ROW + K * E,
                       j * C:(j + 1) * C].set(w_flat)
        nbuf = nbuf.at[NB_CONVB_ROW, j * C:(j + 1) * C].set(
            params[f"conv{K}_b"][0])
    nbuf = nbuf.at[NB_WHH_ROW:NB_WHH_ROW + H, :4 * H].set(
        params["w_hh"][:, perm])
    nbuf = nbuf.at[NB_WIH_ROW, :4 * H].set(params["w_ih"][0, perm])
    nbuf = nbuf.at[NB_BL_ROW, :4 * H].set(params["b_lstm"][0, perm])

    # wide (OUT_PAD lanes) buffer: FC weight + padded bias only
    wfc = jnp.zeros((WFC_ROWS, OUT_PAD), jnp.float32)
    wfc = wfc.at[:FC_IN, :OUTPUT_SIZE].set(params["w_fc"])
    b_fc_pad = jnp.full((OUT_PAD,), -1e30, jnp.float32)
    b_fc_pad = b_fc_pad.at[:OUTPUT_SIZE].set(params["b_fc"][0])
    wfc = wfc.at[WFC_B_ROW, :].set(b_fc_pad)
    return nbuf, wfc


# ---------------- pure-JAX reference (for correctness check) -----------------
def reference_forward(x1, x2, params):
    H = HIDDEN_SIZE
    pooled = []
    for K in KERNEL_SIZES:
        w = params[f"conv{K}_w"]                       # (K, E, C)
        b = params[f"conv{K}_b"]                       # (1, C)
        L = SEQ1 - K + 1
        patches = jnp.stack([x1[:, k:k + L, :] for k in range(K)], axis=2)
        conv = jnp.einsum("blke,kec->blc", patches, w) + b
        pooled.append(jnp.max(jax.nn.relu(conv), axis=1))
    feat_cnn = jnp.concatenate(pooled, axis=1)

    w_ih, w_hh, b_l = params["w_ih"], params["w_hh"], params["b_lstm"]
    h = jnp.zeros((x2.shape[0], H), jnp.float32)
    c = jnp.zeros_like(h)
    for t in range(x2.shape[1]):
        g = x2[:, t, :] @ w_ih + h @ w_hh + b_l
        i = jax.nn.sigmoid(g[:, :H])
        f = jax.nn.sigmoid(g[:, H:2 * H])
        gg = jnp.tanh(g[:, 2 * H:3 * H])
        o = jax.nn.sigmoid(g[:, 3 * H:])
        c = f * c + i * gg
        h = o * jnp.tanh(c)

    feat = jnp.concatenate([feat_cnn, h], axis=1)
    logits = feat @ params["w_fc"] + params["b_fc"]
    return jax.nn.log_softmax(logits, axis=1)


def init_params(key):
    params = {}
    keys = jax.random.split(key, 4 + 2 * len(KERNEL_SIZES))
    ki = 0
    for K in KERNEL_SIZES:
        scale = 1.0 / np.sqrt(K * EMBED_DIM)
        params[f"conv{K}_w"] = scale * jax.random.normal(
            keys[ki], (K, EMBED_DIM, KERNEL_DIM), jnp.float32)
        params[f"conv{K}_b"] = 0.01 * jax.random.normal(
            keys[ki + 1], (1, KERNEL_DIM), jnp.float32)
        ki += 2
    h_scale = 1.0 / np.sqrt(HIDDEN_SIZE)
    params["w_ih"] = h_scale * jax.random.normal(
        keys[ki], (INPUT_SIZE, 4 * HIDDEN_SIZE), jnp.float32)
    params["w_hh"] = h_scale * jax.random.normal(
        keys[ki + 1], (HIDDEN_SIZE, 4 * HIDDEN_SIZE), jnp.float32)
    params["b_lstm"] = 0.01 * jax.random.normal(
        keys[ki + 2], (1, 4 * HIDDEN_SIZE), jnp.float32)
    fc_in = len(KERNEL_SIZES) * KERNEL_DIM + HIDDEN_SIZE
    params["w_fc"] = (1.0 / np.sqrt(fc_in)) * jax.random.normal(
        keys[ki + 3], (fc_in, OUTPUT_SIZE), jnp.float32)
    params["b_fc"] = jnp.zeros((1, OUTPUT_SIZE), jnp.float32)
    return params


if __name__ == "__main__":
    key = jax.random.PRNGKey(0)
    k_x1, k_x2, k_p = jax.random.split(key, 3)

    # inputs1: (B, S, E) float features (as consumed by Conv2d after unsqueeze)
    x1 = jax.random.normal(k_x1, (BATCH, SEQ1, EMBED_DIM), jnp.float32)
    # inputs2: (B, T, 1) float LSTM input
    x2 = jax.random.normal(k_x2, (BATCH, SEQ2, INPUT_SIZE), jnp.float32)
    params = init_params(k_p)
    nbuf, wfc = pack_params(params)            # one-time parameter packing

    out = cnn_lstm_forward(x1, x2, nbuf, wfc)
    out = jax.block_until_ready(out)

    ref = reference_forward(x1, x2, params)
    np.testing.assert_allclose(np.asarray(out), np.asarray(ref),
                               rtol=1e-4, atol=1e-5)
    assert out.shape == (BATCH, OUTPUT_SIZE)
    print("KERNEL_OK")
</pallas_src>

<mosaic_0001>
module attributes {stable_mosaic.version = 11 : i64} {
  func.func @kernel(%arg0: memref<32x40xf32, #tpu.memory_space<vmem>>, %arg1: memref<8x2x1xf32, #tpu.memory_space<vmem>>, %arg2: memref<80x128xf32, #tpu.memory_space<vmem>>, %arg3: memref<48x128xf32, #tpu.memory_space<vmem>>, %arg4: memref<2x128xf32, #tpu.memory_space<vmem>>) attributes {dimension_semantics = [], scalar_prefetch = 0 : i64, scratch_operands = 0 : i64, tpu.core_type = #tpu.core_type<tc>} {
    %c0 = arith.constant 0 : index
    %c0_0 = arith.constant 0 : index
    %0 = vector.load %arg0[%c0, %c0_0] : memref<32x40xf32, #tpu.memory_space<vmem>>, vector<32x40xf32>
    %c0_1 = arith.constant 0 : index
    %c0_2 = arith.constant 0 : index
    %1 = vector.load %arg2[%c0_1, %c0_2] : memref<80x128xf32, #tpu.memory_space<vmem>>, vector<40x24xf32>
    %c56 = arith.constant 56 : index
    %c0_3 = arith.constant 0 : index
    %2 = vector.load %arg2[%c56, %c0_3] : memref<80x128xf32, #tpu.memory_space<vmem>>, vector<1x24xf32>
    %cst = arith.constant dense<0.000000e+00> : vector<32x24xf32>
    %3 = tpu.matmul %0, %1, %cst {dimension_numbers = #tpu.dot_dimension_numbers<[1], [0], [0], [1], [0, 0, 1, 1], [], []>} : vector<32x40xf32>, vector<40x24xf32>, vector<32x24xf32> -> vector<32x24xf32>
    %4 = vector.broadcast %2 : vector<1x24xf32> to vector<32x24xf32>
    %5 = arith.addf %3, %4 : vector<32x24xf32>
    %cst_4 = arith.constant 0.000000e+00 : f32
    %6 = vector.broadcast %cst_4 : f32 to vector<32x24xf32>
    %7 = arith.maximumf %5, %6 : vector<32x24xf32>
    %8 = vector.shape_cast %7 : vector<32x24xf32> to vector<2x16x24xf32>
    %9 = tpu.iota {dimensions = array<i32: 1>} : vector<1x16x24xi32>
    %10 = tpu.iota {dimensions = array<i32: 2>} : vector<1x16x24xi32>
    %c0_i32 = arith.constant 0 : i32
    %11 = vector.broadcast %c0_i32 : i32 to vector<1x16x24xi32>
    %c0_i32_5 = arith.constant 0 : i32
    %12 = vector.broadcast %c0_i32_5 : i32 to vector<1x16x24xi32>
    %13 = arith.cmpi sge, %10, %12 : vector<1x16x24xi32>
    %c8_i32 = arith.constant 8 : i32
    %14 = vector.broadcast %c8_i32 : i32 to vector<1x16x24xi32>
    %15 = arith.cmpi slt, %10, %14 : vector<1x16x24xi32>
    %16 = arith.andi %13, %15 : vector<1x16x24xi1>
    %c14_i32 = arith.constant 14 : i32
    %17 = vector.broadcast %c14_i32 : i32 to vector<1x16x24xi32>
    %18 = arith.select %16, %17, %11 : vector<1x16x24xi1>, vector<1x16x24xi32>
    %c8_i32_6 = arith.constant 8 : i32
    %19 = vector.broadcast %c8_i32_6 : i32 to vector<1x16x24xi32>
    %20 = arith.cmpi sge, %10, %19 : vector<1x16x24xi32>
    %c16_i32 = arith.constant 16 : i32
    %21 = vector.broadcast %c16_i32 : i32 to vector<1x16x24xi32>
    %22 = arith.cmpi slt, %10, %21 : vector<1x16x24xi32>
    %23 = arith.andi %20, %22 : vector<1x16x24xi1>
    %c13_i32 = arith.constant 13 : i32
    %24 = vector.broadcast %c13_i32 : i32 to vector<1x16x24xi32>
    %25 = arith.select %23, %24, %18 : vector<1x16x24xi1>, vector<1x16x24xi32>
    %c16_i32_7 = arith.constant 16 : i32
    %26 = vector.broadcast %c16_i32_7 : i32 to vector<1x16x24xi32>
    %27 = arith.cmpi sge, %10, %26 : vector<1x16x24xi32>
    %c24_i32 = arith.constant 24 : i32
    %28 = vector.broadcast %c24_i32 : i32 to vector<1x16x24xi32>
    %29 = arith.cmpi slt, %10, %28 : vector<1x16x24xi32>
    %30 = arith.andi %27, %29 : vector<1x16x24xi1>
    %c12_i32 = arith.constant 12 : i32
    %31 = vector.broadcast %c12_i32 : i32 to vector<1x16x24xi32>
    %32 = arith.select %30, %31, %25 : vector<1x16x24xi1>, vector<1x16x24xi32>
    %33 = arith.cmpi slt, %9, %32 : vector<1x16x24xi32>
    %cst_8 = arith.constant 0.000000e+00 : f32
    %34 = vector.shape_cast %33 : vector<1x16x24xi1> to vector<1x16x24xi1>
    %35 = vector.broadcast %34 : vector<1x16x24xi1> to vector<2x16x24xi1>
    %36 = vector.broadcast %cst_8 : f32 to vector<2x16x24xf32>
    %37 = arith.select %35, %8, %36 : vector<2x16x24xi1>, vector<2x16x24xf32>
    %cst_9 = arith.constant dense<0xFF800000> : vector<2x24xf32>
    %38 = vector.multi_reduction <maximumf>, %37, %cst_9 [1] : vector<2x16x24xf32> to vector<2x24xf32>
    %c0_10 = arith.constant 0 : index
    %c0_11 = arith.constant 0 : index
    %c0_12 = arith.constant 0 : index
    %39 = vector.load %arg1[%c0_10, %c0_11, %c0_12] : memref<8x2x1xf32, #tpu.memory_space<vmem>>, vector<8x2x1xf32>
    %c64 = arith.constant 64 : index
    %c0_13 = arith.constant 0 : index
    %40 = vector.load %arg2[%c64, %c0_13] : memref<80x128xf32, #tpu.memory_space<vmem>>, vector<1x64xf32>
    %c72 = arith.constant 72 : index
    %c0_14 = arith.constant 0 : index
    %41 = vector.load %arg2[%c72, %c0_14] : memref<80x128xf32, #tpu.memory_space<vmem>>, vector<1x64xf32>
    %42 = vector.shape_cast %40 : vector<1x64xf32> to vector<1x1x64xf32>
    %43 = vector.broadcast %39 : vector<8x2x1xf32> to vector<8x2x64xf32>
    %44 = vector.broadcast %42 : vector<1x1x64xf32> to vector<8x2x64xf32>
    %45 = arith.mulf %43, %44 : vector<8x2x64xf32>
    %46 = vector.shape_cast %41 : vector<1x64xf32> to vector<1x1x64xf32>
    %47 = vector.broadcast %46 : vector<1x1x64xf32> to vector<8x2x64xf32>
    %48 = arith.addf %45, %47 : vector<8x2x64xf32>
    %c40 = arith.constant 40 : index
    %c0_15 = arith.constant 0 : index
    %49 = vector.load %arg2[%c40, %c0_15] : memref<80x128xf32, #tpu.memory_space<vmem>>, vector<16x64xf32>
    %50 = vector.extract_strided_slice %49 {offsets = [0, 0], sizes = [1, 64], strides = [1, 1]} : vector<16x64xf32> to vector<1x64xf32>
    %51 = vector.shape_cast %50 : vector<1x64xf32> to vector<1x64xf32>
    %52 = vector.broadcast %51 : vector<1x64xf32> to vector<2x64xf32>
    %53 = vector.extract_strided_slice %49 {offsets = [1, 0], sizes = [1, 64], strides = [1, 1]} : vector<16x64xf32> to vector<1x64xf32>
    %54 = vector.shape_cast %53 : vector<1x64xf32> to vector<1x64xf32>
    %55 = vector.broadcast %54 : vector<1x64xf32> to vector<2x64xf32>
    %56 = vector.extract_strided_slice %49 {offsets = [2, 0], sizes = [1, 64], strides = [1, 1]} : vector<16x64xf32> to vector<1x64xf32>
    %57 = vector.shape_cast %56 : vector<1x64xf32> to vector<1x64xf32>
    %58 = vector.broadcast %57 : vector<1x64xf32> to vector<2x64xf32>
    %59 = vector.extract_strided_slice %49 {offsets = [3, 0], sizes = [1, 64], strides = [1, 1]} : vector<16x64xf32> to vector<1x64xf32>
    %60 = vector.shape_cast %59 : vector<1x64xf32> to vector<1x64xf32>
    %61 = vector.broadcast %60 : vector<1x64xf32> to vector<2x64xf32>
    %62 = vector.extract_strided_slice %49 {offsets = [4, 0], sizes = [1, 64], strides = [1, 1]} : vector<16x64xf32> to vector<1x64xf32>
    %63 = vector.shape_cast %62 : vector<1x64xf32> to vector<1x64xf32>
    %64 = vector.broadcast %63 : vector<1x64xf32> to vector<2x64xf32>
    %65 = vector.extract_strided_slice %49 {offsets = [5, 0], sizes = [1, 64], strides = [1, 1]} : vector<16x64xf32> to vector<1x64xf32>
    %66 = vector.shape_cast %65 : vector<1x64xf32> to vector<1x64xf32>
    %67 = vector.broadcast %66 : vector<1x64xf32> to vector<2x64xf32>
    %68 = vector.extract_strided_slice %49 {offsets = [6, 0], sizes = [1, 64], strides = [1, 1]} : vector<16x64xf32> to vector<1x64xf32>
    %69 = vector.shape_cast %68 : vector<1x64xf32> to vector<1x64xf32>
    %70 = vector.broadcast %69 : vector<1x64xf32> to vector<2x64xf32>
    %71 = vector.extract_strided_slice %49 {offsets = [7, 0], sizes = [1, 64], strides = [1, 1]} : vector<16x64xf32> to vector<1x64xf32>
    %72 = vector.shape_cast %71 : vector<1x64xf32> to vector<1x64xf32>
    %73 = vector.broadcast %72 : vector<1x64xf32> to vector<2x64xf32>
    %74 = vector.extract_strided_slice %49 {offsets = [8, 0], sizes = [1, 64], strides = [1, 1]} : vector<16x64xf32> to vector<1x64xf32>
    %75 = vector.shape_cast %74 : vector<1x64xf32> to vector<1x64xf32>
    %76 = vector.broadcast %75 : vector<1x64xf32> to vector<2x64xf32>
    %77 = vector.extract_strided_slice %49 {offsets = [9, 0], sizes = [1, 64], strides = [1, 1]} : vector<16x64xf32> to vector<1x64xf32>
    %78 = vector.shape_cast %77 : vector<1x64xf32> to vector<1x64xf32>
    %79 = vector.broadcast %78 : vector<1x64xf32> to vector<2x64xf32>
    %80 = vector.extract_strided_slice %49 {offsets = [10, 0], sizes = [1, 64], strides = [1, 1]} : vector<16x64xf32> to vector<1x64xf32>
    %81 = vector.shape_cast %80 : vector<1x64xf32> to vector<1x64xf32>
    %82 = vector.broadcast %81 : vector<1x64xf32> to vector<2x64xf32>
    %83 = vector.extract_strided_slice %49 {offsets = [11, 0], sizes = [1, 64], strides = [1, 1]} : vector<16x64xf32> to vector<1x64xf32>
    %84 = vector.shape_cast %83 : vector<1x64xf32> to vector<1x64xf32>
    %85 = vector.broadcast %84 : vector<1x64xf32> to vector<2x64xf32>
    %86 = vector.extract_strided_slice %49 {offsets = [12, 0], sizes = [1, 64], strides = [1, 1]} : vector<16x64xf32> to vector<1x64xf32>
    %87 = vector.shape_cast %86 : vector<1x64xf32> to vector<1x64xf32>
    %88 = vector.broadcast %87 : vector<1x64xf32> to vector<2x64xf32>
    %89 = vector.extract_strided_slice %49 {offsets = [13, 0], sizes = [1, 64], strides = [1, 1]} : vector<16x64xf32> to vector<1x64xf32>
    %90 = vector.shape_cast %89 : vector<1x64xf32> to vector<1x64xf32>
    %91 = vector.broadcast %90 : vector<1x64xf32> to vector<2x64xf32>
    %92 = vector.extract_strided_slice %49 {offsets = [14, 0], sizes = [1, 64], strides = [1, 1]} : vector<16x64xf32> to vector<1x64xf32>
    %93 = vector.shape_cast %92 : vector<1x64xf32> to vector<1x64xf32>
    %94 = vector.broadcast %93 : vector<1x64xf32> to vector<2x64xf32>
    %95 = vector.extract_strided_slice %49 {offsets = [15, 0], sizes = [1, 64], strides = [1, 1]} : vector<16x64xf32> to vector<1x64xf32>
    %96 = vector.shape_cast %95 : vector<1x64xf32> to vector<1x64xf32>
    %97 = vector.broadcast %96 : vector<1x64xf32> to vector<2x64xf32>
    %cst_16 = arith.constant 0.000000e+00 : f32
    %98 = vector.broadcast %cst_16 : f32 to vector<2x16xf32>
    %cst_17 = arith.constant 0.000000e+00 : f32
    %99 = vector.broadcast %cst_17 : f32 to vector<2x16xf32>
    %100 = vector.extract_strided_slice %98 {offsets = [0, 0], sizes = [2, 1], strides = [1, 1]} : vector<2x16xf32> to vector<2x1xf32>
    %101 = vector.broadcast %100 : vector<2x1xf32> to vector<2x64xf32>
    %102 = arith.mulf %101, %52 : vector<2x64xf32>
    %103 = vector.extract_strided_slice %98 {offsets = [0, 1], sizes = [2, 1], strides = [1, 1]} : vector<2x16xf32> to vector<2x1xf32>
    %104 = vector.broadcast %103 : vector<2x1xf32> to vector<2x64xf32>
    %105 = arith.mulf %104, %55 : vector<2x64xf32>
    %106 = vector.extract_strided_slice %98 {offsets = [0, 2], sizes = [2, 1], strides = [1, 1]} : vector<2x16xf32> to vector<2x1xf32>
    %107 = vector.broadcast %106 : vector<2x1xf32> to vector<2x64xf32>
    %108 = arith.mulf %107, %58 : vector<2x64xf32>
    %109 = vector.extract_strided_slice %98 {offsets = [0, 3], sizes = [2, 1], strides = [1, 1]} : vector<2x16xf32> to vector<2x1xf32>
    %110 = vector.broadcast %109 : vector<2x1xf32> to vector<2x64xf32>
    %111 = arith.mulf %110, %61 : vector<2x64xf32>
    %112 = vector.extract_strided_slice %98 {offsets = [0, 4], sizes = [2, 1], strides = [1, 1]} : vector<2x16xf32> to vector<2x1xf32>
    %113 = vector.broadcast %112 : vector<2x1xf32> to vector<2x64xf32>
    %114 = arith.mulf %113, %64 : vector<2x64xf32>
    %115 = vector.extract_strided_slice %98 {offsets = [0, 5], sizes = [2, 1], strides = [1, 1]} : vector<2x16xf32> to vector<2x1xf32>
    %116 = vector.broadcast %115 : vector<2x1xf32> to vector<2x64xf32>
    %117 = arith.mulf %116, %67 : vector<2x64xf32>
    %118 = vector.extract_strided_slice %98 {offsets = [0, 6], sizes = [2, 1], strides = [1, 1]} : vector<2x16xf32> to vector<2x1xf32>
    %119 = vector.broadcast %118 : vector<2x1xf32> to vector<2x64xf32>
    %120 = arith.mulf %119, %70 : vector<2x64xf32>
    %121 = vector.extract_strided_slice %98 {offsets = [0, 7], sizes = [2, 1], strides = [1, 1]} : vector<2x16xf32> to vector<2x1xf32>
    %122 = vector.broadcast %121 : vector<2x1xf32> to vector<2x64xf32>
    %123 = arith.mulf %122, %73 : vector<2x64xf32>
    %124 = vector.extract_strided_slice %98 {offsets = [0, 8], sizes = [2, 1], strides = [1, 1]} : vector<2x16xf32> to vector<2x1xf32>
    %125 = vector.broadcast %124 : vector<2x1xf32> to vector<2x64xf32>
    %126 = arith.mulf %125, %76 : vector<2x64xf32>
    %127 = vector.extract_strided_slice %98 {offsets = [0, 9], sizes = [2, 1], strides = [1, 1]} : vector<2x16xf32> to vector<2x1xf32>
    %128 = vector.broadcast %127 : vector<2x1xf32> to vector<2x64xf32>
    %129 = arith.mulf %128, %79 : vector<2x64xf32>
    %130 = vector.extract_strided_slice %98 {offsets = [0, 10], sizes = [2, 1], strides = [1, 1]} : vector<2x16xf32> to vector<2x1xf32>
    %131 = vector.broadcast %130 : vector<2x1xf32> to vector<2x64xf32>
    %132 = arith.mulf %131, %82 : vector<2x64xf32>
    %133 = vector.extract_strided_slice %98 {offsets = [0, 11], sizes = [2, 1], strides = [1, 1]} : vector<2x16xf32> to vector<2x1xf32>
    %134 = vector.broadcast %133 : vector<2x1xf32> to vector<2x64xf32>
    %135 = arith.mulf %134, %85 : vector<2x64xf32>
    %136 = vector.extract_strided_slice %98 {offsets = [0, 12], sizes = [2, 1], strides = [1, 1]} : vector<2x16xf32> to vector<2x1xf32>
    %137 = vector.broadcast %136 : vector<2x1xf32> to vector<2x64xf32>
    %138 = arith.mulf %137, %88 : vector<2x64xf32>
    %139 = vector.extract_strided_slice %98 {offsets = [0, 13], sizes = [2, 1], strides = [1, 1]} : vector<2x16xf32> to vector<2x1xf32>
    %140 = vector.broadcast %139 : vector<2x1xf32> to vector<2x64xf32>
    %141 = arith.mulf %140, %91 : vector<2x64xf32>
    %142 = vector.extract_strided_slice %98 {offsets = [0, 14], sizes = [2, 1], strides = [1, 1]} : vector<2x16xf32> to vector<2x1xf32>
    %143 = vector.broadcast %142 : vector<2x1xf32> to vector<2x64xf32>
    %144 = arith.mulf %143, %94 : vector<2x64xf32>
    %145 = vector.extract_strided_slice %98 {offsets = [0, 15], sizes = [2, 1], strides = [1, 1]} : vector<2x16xf32> to vector<2x1xf32>
    %146 = vector.broadcast %145 : vector<2x1xf32> to vector<2x64xf32>
    %147 = arith.mulf %146, %97 : vector<2x64xf32>
    %148 = arith.addf %102, %105 : vector<2x64xf32>
    %149 = arith.addf %108, %111 : vector<2x64xf32>
    %150 = arith.addf %114, %117 : vector<2x64xf32>
    %151 = arith.addf %120, %123 : vector<2x64xf32>
    %152 = arith.addf %126, %129 : vector<2x64xf32>
    %153 = arith.addf %132, %135 : vector<2x64xf32>
    %154 = arith.addf %138, %141 : vector<2x64xf32>
    %155 = arith.addf %144, %147 : vector<2x64xf32>
    %156 = arith.addf %148, %149 : vector<2x64xf32>
    %157 = arith.addf %150, %151 : vector<2x64xf32>
    %158 = arith.addf %152, %153 : vector<2x64xf32>
    %159 = arith.addf %154, %155 : vector<2x64xf32>
    %160 = arith.addf %156, %157 : vector<2x64xf32>
    %161 = arith.addf %158, %159 : vector<2x64xf32>
    %162 = arith.addf %160, %161 : vector<2x64xf32>
    %163 = vector.extract_strided_slice %48 {offsets = [0, 0, 0], sizes = [1, 2, 64], strides = [1, 1, 1]} : vector<8x2x64xf32> to vector<1x2x64xf32>
    %164 = vector.shape_cast %163 : vector<1x2x64xf32> to vector<2x64xf32>
    %165 = arith.addf %164, %162 : vector<2x64xf32>
    %166 = vector.extract_strided_slice %165 {offsets = [0, 0], sizes = [2, 48], strides = [1, 1]} : vector<2x64xf32> to vector<2x48xf32>
    %167 = arith.negf %166 : vector<2x48xf32>
    %168 = math.exp %167 : vector<2x48xf32>
    %cst_18 = arith.constant 1.000000e+00 : f32
    %169 = vector.broadcast %cst_18 : f32 to vector<2x48xf32>
    %170 = arith.addf %169, %168 : vector<2x48xf32>
    %171 = arith.divf %169, %170 : vector<2x48xf32>
    %172 = vector.extract_strided_slice %165 {offsets = [0, 48], sizes = [2, 16], strides = [1, 1]} : vector<2x64xf32> to vector<2x16xf32>
    %173 = math.tanh %172 : vector<2x16xf32>
    %174 = vector.extract_strided_slice %171 {offsets = [0, 16], sizes = [2, 16], strides = [1, 1]} : vector<2x48xf32> to vector<2x16xf32>
    %175 = arith.mulf %174, %99 : vector<2x16xf32>
    %176 = vector.extract_strided_slice %171 {offsets = [0, 0], sizes = [2, 16], strides = [1, 1]} : vector<2x48xf32> to vector<2x16xf32>
    %177 = arith.mulf %176, %173 : vector<2x16xf32>
    %178 = arith.addf %175, %177 : vector<2x16xf32>
    %179 = vector.extract_strided_slice %171 {offsets = [0, 32], sizes = [2, 16], strides = [1, 1]} : vector<2x48xf32> to vector<2x16xf32>
    %180 = math.tanh %178 : vector<2x16xf32>
    %181 = arith.mulf %179, %180 : vector<2x16xf32>
    %182 = vector.extract_strided_slice %181 {offsets = [0, 0], sizes = [2, 1], strides = [1, 1]} : vector<2x16xf32> to vector<2x1xf32>
    %183 = vector.broadcast %182 : vector<2x1xf32> to vector<2x64xf32>
    %184 = arith.mulf %183, %52 : vector<2x64xf32>
    %185 = vector.extract_strided_slice %181 {offsets = [0, 1], sizes = [2, 1], strides = [1, 1]} : vector<2x16xf32> to vector<2x1xf32>
    %186 = vector.broadcast %185 : vector<2x1xf32> to vector<2x64xf32>
    %187 = arith.mulf %186, %55 : vector<2x64xf32>
    %188 = vector.extract_strided_slice %181 {offsets = [0, 2], sizes = [2, 1], strides = [1, 1]} : vector<2x16xf32> to vector<2x1xf32>
    %189 = vector.broadcast %188 : vector<2x1xf32> to vector<2x64xf32>
    %190 = arith.mulf %189, %58 : vector<2x64xf32>
    %191 = vector.extract_strided_slice %181 {offsets = [0, 3], sizes = [2, 1], strides = [1, 1]} : vector<2x16xf32> to vector<2x1xf32>
    %192 = vector.broadcast %191 : vector<2x1xf32> to vector<2x64xf32>
    %193 = arith.mulf %192, %61 : vector<2x64xf32>
    %194 = vector.extract_strided_slice %181 {offsets = [0, 4], sizes = [2, 1], strides = [1, 1]} : vector<2x16xf32> to vector<2x1xf32>
    %195 = vector.broadcast %194 : vector<2x1xf32> to vector<2x64xf32>
    %196 = arith.mulf %195, %64 : vector<2x64xf32>
    %197 = vector.extract_strided_slice %181 {offsets = [0, 5], sizes = [2, 1], strides = [1, 1]} : vector<2x16xf32> to vector<2x1xf32>
    %198 = vector.broadcast %197 : vector<2x1xf32> to vector<2x64xf32>
    %199 = arith.mulf %198, %67 : vector<2x64xf32>
    %200 = vector.extract_strided_slice %181 {offsets = [0, 6], sizes = [2, 1], strides = [1, 1]} : vector<2x16xf32> to vector<2x1xf32>
    %201 = vector.broadcast %200 : vector<2x1xf32> to vector<2x64xf32>
    %202 = arith.mulf %201, %70 : vector<2x64xf32>
    %203 = vector.extract_strided_slice %181 {offsets = [0, 7], sizes = [2, 1], strides = [1, 1]} : vector<2x16xf32> to vector<2x1xf32>
    %204 = vector.broadcast %203 : vector<2x1xf32> to vector<2x64xf32>
    %205 = arith.mulf %204, %73 : vector<2x64xf32>
    %206 = vector.extract_strided_slice %181 {offsets = [0, 8], sizes = [2, 1], strides = [1, 1]} : vector<2x16xf32> to vector<2x1xf32>
    %207 = vector.broadcast %206 : vector<2x1xf32> to vector<2x64xf32>
    %208 = arith.mulf %207, %76 : vector<2x64xf32>
    %209 = vector.extract_strided_slice %181 {offsets = [0, 9], sizes = [2, 1], strides = [1, 1]} : vector<2x16xf32> to vector<2x1xf32>
    %210 = vector.broadcast %209 : vector<2x1xf32> to vector<2x64xf32>
    %211 = arith.mulf %210, %79 : vector<2x64xf32>
    %212 = vector.extract_strided_slice %181 {offsets = [0, 10], sizes = [2, 1], strides = [1, 1]} : vector<2x16xf32> to vector<2x1xf32>
    %213 = vector.broadcast %212 : vector<2x1xf32> to vector<2x64xf32>
    %214 = arith.mulf %213, %82 : vector<2x64xf32>
    %215 = vector.extract_strided_slice %181 {offsets = [0, 11], sizes = [2, 1], strides = [1, 1]} : vector<2x16xf32> to vector<2x1xf32>
    %216 = vector.broadcast %215 : vector<2x1xf32> to vector<2x64xf32>
    %217 = arith.mulf %216, %85 : vector<2x64xf32>
    %218 = vector.extract_strided_slice %181 {offsets = [0, 12], sizes = [2, 1], strides = [1, 1]} : vector<2x16xf32> to vector<2x1xf32>
    %219 = vector.broadcast %218 : vector<2x1xf32> to vector<2x64xf32>
    %220 = arith.mulf %219, %88 : vector<2x64xf32>
    %221 = vector.extract_strided_slice %181 {offsets = [0, 13], sizes = [2, 1], strides = [1, 1]} : vector<2x16xf32> to vector<2x1xf32>
    %222 = vector.broadcast %221 : vector<2x1xf32> to vector<2x64xf32>
    %223 = arith.mulf %222, %91 : vector<2x64xf32>
    %224 = vector.extract_strided_slice %181 {offsets = [0, 14], sizes = [2, 1], strides = [1, 1]} : vector<2x16xf32> to vector<2x1xf32>
    %225 = vector.broadcast %224 : vector<2x1xf32> to vector<2x64xf32>
    %226 = arith.mulf %225, %94 : vector<2x64xf32>
    %227 = vector.extract_strided_slice %181 {offsets = [0, 15], sizes = [2, 1], strides = [1, 1]} : vector<2x16xf32> to vector<2x1xf32>
    %228 = vector.broadcast %227 : vector<2x1xf32> to vector<2x64xf32>
    %229 = arith.mulf %228, %97 : vector<2x64xf32>
    %230 = arith.addf %184, %187 : vector<2x64xf32>
    %231 = arith.addf %190, %193 : vector<2x64xf32>
    %232 = arith.addf %196, %199 : vector<2x64xf32>
    %233 = arith.addf %202, %205 : vector<2x64xf32>
    %234 = arith.addf %208, %211 : vector<2x64xf32>
    %235 = arith.addf %214, %217 : vector<2x64xf32>
    %236 = arith.addf %220, %223 : vector<2x64xf32>
    %237 = arith.addf %226, %229 : vector<2x64xf32>
    %238 = arith.addf %230, %231 : vector<2x64xf32>
    %239 = arith.addf %232, %233 : vector<2x64xf32>
    %240 = arith.addf %234, %235 : vector<2x64xf32>
    %241 = arith.addf %236, %237 : vector<2x64xf32>
    %242 = arith.addf %238, %239 : vector<2x64xf32>
    %243 = arith.addf %240, %241 : vector<2x64xf32>
    %244 = arith.addf %242, %243 : vector<2x64xf32>
    %245 = vector.extract_strided_slice %48 {offsets = [1, 0, 0], sizes = [1, 2, 64], strides = [1, 1, 1]} : vector<8x2x64xf32> to vector<1x2x64xf32>
    %246 = vector.shape_cast %245 : vector<1x2x64xf32> to vector<2x64xf32>
    %247 = arith.addf %246, %244 : vector<2x64xf32>
    %248 = vector.extract_strided_slice %247 {offsets = [0, 0], sizes = [2, 48], strides = [1, 1]} : vector<2x64xf32> to vector<2x48xf32>
    %249 = arith.negf %248 : vector<2x48xf32>
    %250 = math.exp %249 : vector<2x48xf32>
    %cst_19 = arith.constant 1.000000e+00 : f32
    %251 = vector.broadcast %cst_19 : f32 to vector<2x48xf32>
    %252 = arith.addf %251, %250 : vector<2x48xf32>
    %253 = arith.divf %251, %252 : vector<2x48xf32>
    %254 = vector.extract_strided_slice %247 {offsets = [0, 48], sizes = [2, 16], strides = [1, 1]} : vector<2x64xf32> to vector<2x16xf32>
    %255 = math.tanh %254 : vector<2x16xf32>
    %256 = vector.extract_strided_slice %253 {offsets = [0, 16], sizes = [2, 16], strides = [1, 1]} : vector<2x48xf32> to vector<2x16xf32>
    %257 = arith.mulf %256, %178 : vector<2x16xf32>
    %258 = vector.extract_strided_slice %253 {offsets = [0, 0], sizes = [2, 16], strides = [1, 1]} : vector<2x48xf32> to vector<2x16xf32>
    %259 = arith.mulf %258, %255 : vector<2x16xf32>
    %260 = arith.addf %257, %259 : vector<2x16xf32>
    %261 = vector.extract_strided_slice %253 {offsets = [0, 32], sizes = [2, 16], strides = [1, 1]} : vector<2x48xf32> to vector<2x16xf32>
    %262 = math.tanh %260 : vector<2x16xf32>
    %263 = arith.mulf %261, %262 : vector<2x16xf32>
    %264 = vector.extract_strided_slice %263 {offsets = [0, 0], sizes = [2, 1], strides = [1, 1]} : vector<2x16xf32> to vector<2x1xf32>
    %265 = vector.broadcast %264 : vector<2x1xf32> to vector<2x64xf32>
    %266 = arith.mulf %265, %52 : vector<2x64xf32>
    %267 = vector.extract_strided_slice %263 {offsets = [0, 1], sizes = [2, 1], strides = [1, 1]} : vector<2x16xf32> to vector<2x1xf32>
    %268 = vector.broadcast %267 : vector<2x1xf32> to vector<2x64xf32>
    %269 = arith.mulf %268, %55 : vector<2x64xf32>
    %270 = vector.extract_strided_slice %263 {offsets = [0, 2], sizes = [2, 1], strides = [1, 1]} : vector<2x16xf32> to vector<2x1xf32>
    %271 = vector.broadcast %270 : vector<2x1xf32> to vector<2x64xf32>
    %272 = arith.mulf %271, %58 : vector<2x64xf32>
    %273 = vector.extract_strided_slice %263 {offsets = [0, 3], sizes = [2, 1], strides = [1, 1]} : vector<2x16xf32> to vector<2x1xf32>
    %274 = vector.broadcast %273 : vector<2x1xf32> to vector<2x64xf32>
    %275 = arith.mulf %274, %61 : vector<2x64xf32>
    %276 = vector.extract_strided_slice %263 {offsets = [0, 4], sizes = [2, 1], strides = [1, 1]} : vector<2x16xf32> to vector<2x1xf32>
    %277 = vector.broadcast %276 : vector<2x1xf32> to vector<2x64xf32>
    %278 = arith.mulf %277, %64 : vector<2x64xf32>
    %279 = vector.extract_strided_slice %263 {offsets = [0, 5], sizes = [2, 1], strides = [1, 1]} : vector<2x16xf32> to vector<2x1xf32>
    %280 = vector.broadcast %279 : vector<2x1xf32> to vector<2x64xf32>
    %281 = arith.mulf %280, %67 : vector<2x64xf32>
    %282 = vector.extract_strided_slice %263 {offsets = [0, 6], sizes = [2, 1], strides = [1, 1]} : vector<2x16xf32> to vector<2x1xf32>
    %283 = vector.broadcast %282 : vector<2x1xf32> to vector<2x64xf32>
    %284 = arith.mulf %283, %70 : vector<2x64xf32>
    %285 = vector.extract_strided_slice %263 {offsets = [0, 7], sizes = [2, 1], strides = [1, 1]} : vector<2x16xf32> to vector<2x1xf32>
    %286 = vector.broadcast %285 : vector<2x1xf32> to vector<2x64xf32>
    %287 = arith.mulf %286, %73 : vector<2x64xf32>
    %288 = vector.extract_strided_slice %263 {offsets = [0, 8], sizes = [2, 1], strides = [1, 1]} : vector<2x16xf32> to vector<2x1xf32>
    %289 = vector.broadcast %288 : vector<2x1xf32> to vector<2x64xf32>
    %290 = arith.mulf %289, %76 : vector<2x64xf32>
    %291 = vector.extract_strided_slice %263 {offsets = [0, 9], sizes = [2, 1], strides = [1, 1]} : vector<2x16xf32> to vector<2x1xf32>
    %292 = vector.broadcast %291 : vector<2x1xf32> to vector<2x64xf32>
    %293 = arith.mulf %292, %79 : vector<2x64xf32>
    %294 = vector.extract_strided_slice %263 {offsets = [0, 10], sizes = [2, 1], strides = [1, 1]} : vector<2x16xf32> to vector<2x1xf32>
    %295 = vector.broadcast %294 : vector<2x1xf32> to vector<2x64xf32>
    %296 = arith.mulf %295, %82 : vector<2x64xf32>
    %297 = vector.extract_strided_slice %263 {offsets = [0, 11], sizes = [2, 1], strides = [1, 1]} : vector<2x16xf32> to vector<2x1xf32>
    %298 = vector.broadcast %297 : vector<2x1xf32> to vector<2x64xf32>
    %299 = arith.mulf %298, %85 : vector<2x64xf32>
    %300 = vector.extract_strided_slice %263 {offsets = [0, 12], sizes = [2, 1], strides = [1, 1]} : vector<2x16xf32> to vector<2x1xf32>
    %301 = vector.broadcast %300 : vector<2x1xf32> to vector<2x64xf32>
    %302 = arith.mulf %301, %88 : vector<2x64xf32>
    %303 = vector.extract_strided_slice %263 {offsets = [0, 13], sizes = [2, 1], strides = [1, 1]} : vector<2x16xf32> to vector<2x1xf32>
    %304 = vector.broadcast %303 : vector<2x1xf32> to vector<2x64xf32>
    %305 = arith.mulf %304, %91 : vector<2x64xf32>
    %306 = vector.extract_strided_slice %263 {offsets = [0, 14], sizes = [2, 1], strides = [1, 1]} : vector<2x16xf32> to vector<2x1xf32>
    %307 = vector.broadcast %306 : vector<2x1xf32> to vector<2x64xf32>
    %308 = arith.mulf %307, %94 : vector<2x64xf32>
    %309 = vector.extract_strided_slice %263 {offsets = [0, 15], sizes = [2, 1], strides = [1, 1]} : vector<2x16xf32> to vector<2x1xf32>
    %310 = vector.broadcast %309 : vector<2x1xf32> to vector<2x64xf32>
    %311 = arith.mulf %310, %97 : vector<2x64xf32>
    %312 = arith.addf %266, %269 : vector<2x64xf32>
    %313 = arith.addf %272, %275 : vector<2x64xf32>
    %314 = arith.addf %278, %281 : vector<2x64xf32>
    %315 = arith.addf %284, %287 : vector<2x64xf32>
    %316 = arith.addf %290, %293 : vector<2x64xf32>
    %317 = arith.addf %296, %299 : vector<2x64xf32>
    %318 = arith.addf %302, %305 : vector<2x64xf32>
    %319 = arith.addf %308, %311 : vector<2x64xf32>
    %320 = arith.addf %312, %313 : vector<2x64xf32>
    %321 = arith.addf %314, %315 : vector<2x64xf32>
    %322 = arith.addf %316, %317 : vector<2x64xf32>
    %323 = arith.addf %318, %319 : vector<2x64xf32>
    %324 = arith.addf %320, %321 : vector<2x64xf32>
    %325 = arith.addf %322, %323 : vector<2x64xf32>
    %326 = arith.addf %324, %325 : vector<2x64xf32>
    %327 = vector.extract_strided_slice %48 {offsets = [2, 0, 0], sizes = [1, 2, 64], strides = [1, 1, 1]} : vector<8x2x64xf32> to vector<1x2x64xf32>
    %328 = vector.shape_cast %327 : vector<1x2x64xf32> to vector<2x64xf32>
    %329 = arith.addf %328, %326 : vector<2x64xf32>
    %330 = vector.extract_strided_slice %329 {offsets = [0, 0], sizes = [2, 48], strides = [1, 1]} : vector<2x64xf32> to vector<2x48xf32>
    %331 = arith.negf %330 : vector<2x48xf32>
    %332 = math.exp %331 : vector<2x48xf32>
    %cst_20 = arith.constant 1.000000e+00 : f32
    %333 = vector.broadcast %cst_20 : f32 to vector<2x48xf32>
    %334 = arith.addf %333, %332 : vector<2x48xf32>
    %335 = arith.divf %333, %334 : vector<2x48xf32>
    %336 = vector.extract_strided_slice %329 {offsets = [0, 48], sizes = [2, 16], strides = [1, 1]} : vector<2x64xf32> to vector<2x16xf32>
    %337 = math.tanh %336 : vector<2x16xf32>
    %338 = vector.extract_strided_slice %335 {offsets = [0, 16], sizes = [2, 16], strides = [1, 1]} : vector<2x48xf32> to vector<2x16xf32>
    %339 = arith.mulf %338, %260 : vector<2x16xf32>
    %340 = vector.extract_strided_slice %335 {offsets = [0, 0], sizes = [2, 16], strides = [1, 1]} : vector<2x48xf32> to vector<2x16xf32>
    %341 = arith.mulf %340, %337 : vector<2x16xf32>
    %342 = arith.addf %339, %341 : vector<2x16xf32>
    %343 = vector.extract_strided_slice %335 {offsets = [0, 32], sizes = [2, 16], strides = [1, 1]} : vector<2x48xf32> to vector<2x16xf32>
    %344 = math.tanh %342 : vector<2x16xf32>
    %345 = arith.mulf %343, %344 : vector<2x16xf32>
    %346 = vector.extract_strided_slice %345 {offsets = [0, 0], sizes = [2, 1], strides = [1, 1]} : vector<2x16xf32> to vector<2x1xf32>
    %347 = vector.broadcast %346 : vector<2x1xf32> to vector<2x64xf32>
    %348 = arith.mulf %347, %52 : vector<2x64xf32>
    %349 = vector.extract_strided_slice %345 {offsets = [0, 1], sizes = [2, 1], strides = [1, 1]} : vector<2x16xf32> to vector<2x1xf32>
    %350 = vector.broadcast %349 : vector<2x1xf32> to vector<2x64xf32>
    %351 = arith.mulf %350, %55 : vector<2x64xf32>
    %352 = vector.extract_strided_slice %345 {offsets = [0, 2], sizes = [2, 1], strides = [1, 1]} : vector<2x16xf32> to vector<2x1xf32>
    %353 = vector.broadcast %352 : vector<2x1xf32> to vector<2x64xf32>
    %354 = arith.mulf %353, %58 : vector<2x64xf32>
    %355 = vector.extract_strided_slice %345 {offsets = [0, 3], sizes = [2, 1], strides = [1, 1]} : vector<2x16xf32> to vector<2x1xf32>
    %356 = vector.broadcast %355 : vector<2x1xf32> to vector<2x64xf32>
    %357 = arith.mulf %356, %61 : vector<2x64xf32>
    %358 = vector.extract_strided_slice %345 {offsets = [0, 4], sizes = [2, 1], strides = [1, 1]} : vector<2x16xf32> to vector<2x1xf32>
    %359 = vector.broadcast %358 : vector<2x1xf32> to vector<2x64xf32>
    %360 = arith.mulf %359, %64 : vector<2x64xf32>
    %361 = vector.extract_strided_slice %345 {offsets = [0, 5], sizes = [2, 1], strides = [1, 1]} : vector<2x16xf32> to vector<2x1xf32>
    %362 = vector.broadcast %361 : vector<2x1xf32> to vector<2x64xf32>
    %363 = arith.mulf %362, %67 : vector<2x64xf32>
    %364 = vector.extract_strided_slice %345 {offsets = [0, 6], sizes = [2, 1], strides = [1, 1]} : vector<2x16xf32> to vector<2x1xf32>
    %365 = vector.broadcast %364 : vector<2x1xf32> to vector<2x64xf32>
    %366 = arith.mulf %365, %70 : vector<2x64xf32>
    %367 = vector.extract_strided_slice %345 {offsets = [0, 7], sizes = [2, 1], strides = [1, 1]} : vector<2x16xf32> to vector<2x1xf32>
    %368 = vector.broadcast %367 : vector<2x1xf32> to vector<2x64xf32>
    %369 = arith.mulf %368, %73 : vector<2x64xf32>
    %370 = vector.extract_strided_slice %345 {offsets = [0, 8], sizes = [2, 1], strides = [1, 1]} : vector<2x16xf32> to vector<2x1xf32>
    %371 = vector.broadcast %370 : vector<2x1xf32> to vector<2x64xf32>
    %372 = arith.mulf %371, %76 : vector<2x64xf32>
    %373 = vector.extract_strided_slice %345 {offsets = [0, 9], sizes = [2, 1], strides = [1, 1]} : vector<2x16xf32> to vector<2x1xf32>
    %374 = vector.broadcast %373 : vector<2x1xf32> to vector<2x64xf32>
    %375 = arith.mulf %374, %79 : vector<2x64xf32>
    %376 = vector.extract_strided_slice %345 {offsets = [0, 10], sizes = [2, 1], strides = [1, 1]} : vector<2x16xf32> to vector<2x1xf32>
    %377 = vector.broadcast %376 : vector<2x1xf32> to vector<2x64xf32>
    %378 = arith.mulf %377, %82 : vector<2x64xf32>
    %379 = vector.extract_strided_slice %345 {offsets = [0, 11], sizes = [2, 1], strides = [1, 1]} : vector<2x16xf32> to vector<2x1xf32>
    %380 = vector.broadcast %379 : vector<2x1xf32> to vector<2x64xf32>
    %381 = arith.mulf %380, %85 : vector<2x64xf32>
    %382 = vector.extract_strided_slice %345 {offsets = [0, 12], sizes = [2, 1], strides = [1, 1]} : vector<2x16xf32> to vector<2x1xf32>
    %383 = vector.broadcast %382 : vector<2x1xf32> to vector<2x64xf32>
    %384 = arith.mulf %383, %88 : vector<2x64xf32>
    %385 = vector.extract_strided_slice %345 {offsets = [0, 13], sizes = [2, 1], strides = [1, 1]} : vector<2x16xf32> to vector<2x1xf32>
    %386 = vector.broadcast %385 : vector<2x1xf32> to vector<2x64xf32>
    %387 = arith.mulf %386, %91 : vector<2x64xf32>
    %388 = vector.extract_strided_slice %345 {offsets = [0, 14], sizes = [2, 1], strides = [1, 1]} : vector<2x16xf32> to vector<2x1xf32>
    %389 = vector.broadcast %388 : vector<2x1xf32> to vector<2x64xf32>
    %390 = arith.mulf %389, %94 : vector<2x64xf32>
    %391 = vector.extract_strided_slice %345 {offsets = [0, 15], sizes = [2, 1], strides = [1, 1]} : vector<2x16xf32> to vector<2x1xf32>
    %392 = vector.broadcast %391 : vector<2x1xf32> to vector<2x64xf32>
    %393 = arith.mulf %392, %97 : vector<2x64xf32>
    %394 = arith.addf %348, %351 : vector<2x64xf32>
    %395 = arith.addf %354, %357 : vector<2x64xf32>
    %396 = arith.addf %360, %363 : vector<2x64xf32>
    %397 = arith.addf %366, %369 : vector<2x64xf32>
    %398 = arith.addf %372, %375 : vector<2x64xf32>
    %399 = arith.addf %378, %381 : vector<2x64xf32>
    %400 = arith.addf %384, %387 : vector<2x64xf32>
    %401 = arith.addf %390, %393 : vector<2x64xf32>
    %402 = arith.addf %394, %395 : vector<2x64xf32>
    %403 = arith.addf %396, %397 : vector<2x64xf32>
    %404 = arith.addf %398, %399 : vector<2x64xf32>
    %405 = arith.addf %400, %401 : vector<2x64xf32>
    %406 = arith.addf %402, %403 : vector<2x64xf32>
    %407 = arith.addf %404, %405 : vector<2x64xf32>
    %408 = arith.addf %406, %407 : vector<2x64xf32>
    %409 = vector.extract_strided_slice %48 {offsets = [3, 0, 0], sizes = [1, 2, 64], strides = [1, 1, 1]} : vector<8x2x64xf32> to vector<1x2x64xf32>
    %410 = vector.shape_cast %409 : vector<1x2x64xf32> to vector<2x64xf32>
    %411 = arith.addf %410, %408 : vector<2x64xf32>
    %412 = vector.extract_strided_slice %411 {offsets = [0, 0], sizes = [2, 48], strides = [1, 1]} : vector<2x64xf32> to vector<2x48xf32>
    %413 = arith.negf %412 : vector<2x48xf32>
    %414 = math.exp %413 : vector<2x48xf32>
    %cst_21 = arith.constant 1.000000e+00 : f32
    %415 = vector.broadcast %cst_21 : f32 to vector<2x48xf32>
    %416 = arith.addf %415, %414 : vector<2x48xf32>
    %417 = arith.divf %415, %416 : vector<2x48xf32>
    %418 = vector.extract_strided_slice %411 {offsets = [0, 48], sizes = [2, 16], strides = [1, 1]} : vector<2x64xf32> to vector<2x16xf32>
    %419 = math.tanh %418 : vector<2x16xf32>
    %420 = vector.extract_strided_slice %417 {offsets = [0, 16], sizes = [2, 16], strides = [1, 1]} : vector<2x48xf32> to vector<2x16xf32>
    %421 = arith.mulf %420, %342 : vector<2x16xf32>
    %422 = vector.extract_strided_slice %417 {offsets = [0, 0], sizes = [2, 16], strides = [1, 1]} : vector<2x48xf32> to vector<2x16xf32>
    %423 = arith.mulf %422, %419 : vector<2x16xf32>
    %424 = arith.addf %421, %423 : vector<2x16xf32>
    %425 = vector.extract_strided_slice %417 {offsets = [0, 32], sizes = [2, 16], strides = [1, 1]} : vector<2x48xf32> to vector<2x16xf32>
    %426 = math.tanh %424 : vector<2x16xf32>
    %427 = arith.mulf %425, %426 : vector<2x16xf32>
    %428 = vector.extract_strided_slice %427 {offsets = [0, 0], sizes = [2, 1], strides = [1, 1]} : vector<2x16xf32> to vector<2x1xf32>
    %429 = vector.broadcast %428 : vector<2x1xf32> to vector<2x64xf32>
    %430 = arith.mulf %429, %52 : vector<2x64xf32>
    %431 = vector.extract_strided_slice %427 {offsets = [0, 1], sizes = [2, 1], strides = [1, 1]} : vector<2x16xf32> to vector<2x1xf32>
    %432 = vector.broadcast %431 : vector<2x1xf32> to vector<2x64xf32>
    %433 = arith.mulf %432, %55 : vector<2x64xf32>
    %434 = vector.extract_strided_slice %427 {offsets = [0, 2], sizes = [2, 1], strides = [1, 1]} : vector<2x16xf32> to vector<2x1xf32>
    %435 = vector.broadcast %434 : vector<2x1xf32> to vector<2x64xf32>
    %436 = arith.mulf %435, %58 : vector<2x64xf32>
    %437 = vector.extract_strided_slice %427 {offsets = [0, 3], sizes = [2, 1], strides = [1, 1]} : vector<2x16xf32> to vector<2x1xf32>
    %438 = vector.broadcast %437 : vector<2x1xf32> to vector<2x64xf32>
    %439 = arith.mulf %438, %61 : vector<2x64xf32>
    %440 = vector.extract_strided_slice %427 {offsets = [0, 4], sizes = [2, 1], strides = [1, 1]} : vector<2x16xf32> to vector<2x1xf32>
    %441 = vector.broadcast %440 : vector<2x1xf32> to vector<2x64xf32>
    %442 = arith.mulf %441, %64 : vector<2x64xf32>
    %443 = vector.extract_strided_slice %427 {offsets = [0, 5], sizes = [2, 1], strides = [1, 1]} : vector<2x16xf32> to vector<2x1xf32>
    %444 = vector.broadcast %443 : vector<2x1xf32> to vector<2x64xf32>
    %445 = arith.mulf %444, %67 : vector<2x64xf32>
    %446 = vector.extract_strided_slice %427 {offsets = [0, 6], sizes = [2, 1], strides = [1, 1]} : vector<2x16xf32> to vector<2x1xf32>
    %447 = vector.broadcast %446 : vector<2x1xf32> to vector<2x64xf32>
    %448 = arith.mulf %447, %70 : vector<2x64xf32>
    %449 = vector.extract_strided_slice %427 {offsets = [0, 7], sizes = [2, 1], strides = [1, 1]} : vector<2x16xf32> to vector<2x1xf32>
    %450 = vector.broadcast %449 : vector<2x1xf32> to vector<2x64xf32>
    %451 = arith.mulf %450, %73 : vector<2x64xf32>
    %452 = vector.extract_strided_slice %427 {offsets = [0, 8], sizes = [2, 1], strides = [1, 1]} : vector<2x16xf32> to vector<2x1xf32>
    %453 = vector.broadcast %452 : vector<2x1xf32> to vector<2x64xf32>
    %454 = arith.mulf %453, %76 : vector<2x64xf32>
    %455 = vector.extract_strided_slice %427 {offsets = [0, 9], sizes = [2, 1], strides = [1, 1]} : vector<2x16xf32> to vector<2x1xf32>
    %456 = vector.broadcast %455 : vector<2x1xf32> to vector<2x64xf32>
    %457 = arith.mulf %456, %79 : vector<2x64xf32>
    %458 = vector.extract_strided_slice %427 {offsets = [0, 10], sizes = [2, 1], strides = [1, 1]} : vector<2x16xf32> to vector<2x1xf32>
    %459 = vector.broadcast %458 : vector<2x1xf32> to vector<2x64xf32>
    %460 = arith.mulf %459, %82 : vector<2x64xf32>
    %461 = vector.extract_strided_slice %427 {offsets = [0, 11], sizes = [2, 1], strides = [1, 1]} : vector<2x16xf32> to vector<2x1xf32>
    %462 = vector.broadcast %461 : vector<2x1xf32> to vector<2x64xf32>
    %463 = arith.mulf %462, %85 : vector<2x64xf32>
    %464 = vector.extract_strided_slice %427 {offsets = [0, 12], sizes = [2, 1], strides = [1, 1]} : vector<2x16xf32> to vector<2x1xf32>
    %465 = vector.broadcast %464 : vector<2x1xf32> to vector<2x64xf32>
    %466 = arith.mulf %465, %88 : vector<2x64xf32>
    %467 = vector.extract_strided_slice %427 {offsets = [0, 13], sizes = [2, 1], strides = [1, 1]} : vector<2x16xf32> to vector<2x1xf32>
    %468 = vector.broadcast %467 : vector<2x1xf32> to vector<2x64xf32>
    %469 = arith.mulf %468, %91 : vector<2x64xf32>
    %470 = vector.extract_strided_slice %427 {offsets = [0, 14], sizes = [2, 1], strides = [1, 1]} : vector<2x16xf32> to vector<2x1xf32>
    %471 = vector.broadcast %470 : vector<2x1xf32> to vector<2x64xf32>
    %472 = arith.mulf %471, %94 : vector<2x64xf32>
    %473 = vector.extract_strided_slice %427 {offsets = [0, 15], sizes = [2, 1], strides = [1, 1]} : vector<2x16xf32> to vector<2x1xf32>
    %474 = vector.broadcast %473 : vector<2x1xf32> to vector<2x64xf32>
    %475 = arith.mulf %474, %97 : vector<2x64xf32>
    %476 = arith.addf %430, %433 : vector<2x64xf32>
    %477 = arith.addf %436, %439 : vector<2x64xf32>
    %478 = arith.addf %442, %445 : vector<2x64xf32>
    %479 = arith.addf %448, %451 : vector<2x64xf32>
    %480 = arith.addf %454, %457 : vector<2x64xf32>
    %481 = arith.addf %460, %463 : vector<2x64xf32>
    %482 = arith.addf %466, %469 : vector<2x64xf32>
    %483 = arith.addf %472, %475 : vector<2x64xf32>
    %484 = arith.addf %476, %477 : vector<2x64xf32>
    %485 = arith.addf %478, %479 : vector<2x64xf32>
    %486 = arith.addf %480, %481 : vector<2x64xf32>
    %487 = arith.addf %482, %483 : vector<2x64xf32>
    %488 = arith.addf %484, %485 : vector<2x64xf32>
    %489 = arith.addf %486, %487 : vector<2x64xf32>
    %490 = arith.addf %488, %489 : vector<2x64xf32>
    %491 = vector.extract_strided_slice %48 {offsets = [4, 0, 0], sizes = [1, 2, 64], strides = [1, 1, 1]} : vector<8x2x64xf32> to vector<1x2x64xf32>
    %492 = vector.shape_cast %491 : vector<1x2x64xf32> to vector<2x64xf32>
    %493 = arith.addf %492, %490 : vector<2x64xf32>
    %494 = vector.extract_strided_slice %493 {offsets = [0, 0], sizes = [2, 48], strides = [1, 1]} : vector<2x64xf32> to vector<2x48xf32>
    %495 = arith.negf %494 : vector<2x48xf32>
    %496 = math.exp %495 : vector<2x48xf32>
    %cst_22 = arith.constant 1.000000e+00 : f32
    %497 = vector.broadcast %cst_22 : f32 to vector<2x48xf32>
    %498 = arith.addf %497, %496 : vector<2x48xf32>
    %499 = arith.divf %497, %498 : vector<2x48xf32>
    %500 = vector.extract_strided_slice %493 {offsets = [0, 48], sizes = [2, 16], strides = [1, 1]} : vector<2x64xf32> to vector<2x16xf32>
    %501 = math.tanh %500 : vector<2x16xf32>
    %502 = vector.extract_strided_slice %499 {offsets = [0, 16], sizes = [2, 16], strides = [1, 1]} : vector<2x48xf32> to vector<2x16xf32>
    %503 = arith.mulf %502, %424 : vector<2x16xf32>
    %504 = vector.extract_strided_slice %499 {offsets = [0, 0], sizes = [2, 16], strides = [1, 1]} : vector<2x48xf32> to vector<2x16xf32>
    %505 = arith.mulf %504, %501 : vector<2x16xf32>
    %506 = arith.addf %503, %505 : vector<2x16xf32>
    %507 = vector.extract_strided_slice %499 {offsets = [0, 32], sizes = [2, 16], strides = [1, 1]} : vector<2x48xf32> to vector<2x16xf32>
    %508 = math.tanh %506 : vector<2x16xf32>
    %509 = arith.mulf %507, %508 : vector<2x16xf32>
    %510 = vector.extract_strided_slice %509 {offsets = [0, 0], sizes = [2, 1], strides = [1, 1]} : vector<2x16xf32> to vector<2x1xf32>
    %511 = vector.broadcast %510 : vector<2x1xf32> to vector<2x64xf32>
    %512 = arith.mulf %511, %52 : vector<2x64xf32>
    %513 = vector.extract_strided_slice %509 {offsets = [0, 1], sizes = [2, 1], strides = [1, 1]} : vector<2x16xf32> to vector<2x1xf32>
    %514 = vector.broadcast %513 : vector<2x1xf32> to vector<2x64xf32>
    %515 = arith.mulf %514, %55 : vector<2x64xf32>
    %516 = vector.extract_strided_slice %509 {offsets = [0, 2], sizes = [2, 1], strides = [1, 1]} : vector<2x16xf32> to vector<2x1xf32>
    %517 = vector.broadcast %516 : vector<2x1xf32> to vector<2x64xf32>
    %518 = arith.mulf %517, %58 : vector<2x64xf32>
    %519 = vector.extract_strided_slice %509 {offsets = [0, 3], sizes = [2, 1], strides = [1, 1]} : vector<2x16xf32> to vector<2x1xf32>
    %520 = vector.broadcast %519 : vector<2x1xf32> to vector<2x64xf32>
    %521 = arith.mulf %520, %61 : vector<2x64xf32>
    %522 = vector.extract_strided_slice %509 {offsets = [0, 4], sizes = [2, 1], strides = [1, 1]} : vector<2x16xf32> to vector<2x1xf32>
    %523 = vector.broadcast %522 : vector<2x1xf32> to vector<2x64xf32>
    %524 = arith.mulf %523, %64 : vector<2x64xf32>
    %525 = vector.extract_strided_slice %509 {offsets = [0, 5], sizes = [2, 1], strides = [1, 1]} : vector<2x16xf32> to vector<2x1xf32>
    %526 = vector.broadcast %525 : vector<2x1xf32> to vector<2x64xf32>
    %527 = arith.mulf %526, %67 : vector<2x64xf32>
    %528 = vector.extract_strided_slice %509 {offsets = [0, 6], sizes = [2, 1], strides = [1, 1]} : vector<2x16xf32> to vector<2x1xf32>
    %529 = vector.broadcast %528 : vector<2x1xf32> to vector<2x64xf32>
    %530 = arith.mulf %529, %70 : vector<2x64xf32>
    %531 = vector.extract_strided_slice %509 {offsets = [0, 7], sizes = [2, 1], strides = [1, 1]} : vector<2x16xf32> to vector<2x1xf32>
    %532 = vector.broadcast %531 : vector<2x1xf32> to vector<2x64xf32>
    %533 = arith.mulf %532, %73 : vector<2x64xf32>
    %534 = vector.extract_strided_slice %509 {offsets = [0, 8], sizes = [2, 1], strides = [1, 1]} : vector<2x16xf32> to vector<2x1xf32>
    %535 = vector.broadcast %534 : vector<2x1xf32> to vector<2x64xf32>
    %536 = arith.mulf %535, %76 : vector<2x64xf32>
    %537 = vector.extract_strided_slice %509 {offsets = [0, 9], sizes = [2, 1], strides = [1, 1]} : vector<2x16xf32> to vector<2x1xf32>
    %538 = vector.broadcast %537 : vector<2x1xf32> to vector<2x64xf32>
    %539 = arith.mulf %538, %79 : vector<2x64xf32>
    %540 = vector.extract_strided_slice %509 {offsets = [0, 10], sizes = [2, 1], strides = [1, 1]} : vector<2x16xf32> to vector<2x1xf32>
    %541 = vector.broadcast %540 : vector<2x1xf32> to vector<2x64xf32>
    %542 = arith.mulf %541, %82 : vector<2x64xf32>
    %543 = vector.extract_strided_slice %509 {offsets = [0, 11], sizes = [2, 1], strides = [1, 1]} : vector<2x16xf32> to vector<2x1xf32>
    %544 = vector.broadcast %543 : vector<2x1xf32> to vector<2x64xf32>
    %545 = arith.mulf %544, %85 : vector<2x64xf32>
    %546 = vector.extract_strided_slice %509 {offsets = [0, 12], sizes = [2, 1], strides = [1, 1]} : vector<2x16xf32> to vector<2x1xf32>
    %547 = vector.broadcast %546 : vector<2x1xf32> to vector<2x64xf32>
    %548 = arith.mulf %547, %88 : vector<2x64xf32>
    %549 = vector.extract_strided_slice %509 {offsets = [0, 13], sizes = [2, 1], strides = [1, 1]} : vector<2x16xf32> to vector<2x1xf32>
    %550 = vector.broadcast %549 : vector<2x1xf32> to vector<2x64xf32>
    %551 = arith.mulf %550, %91 : vector<2x64xf32>
    %552 = vector.extract_strided_slice %509 {offsets = [0, 14], sizes = [2, 1], strides = [1, 1]} : vector<2x16xf32> to vector<2x1xf32>
    %553 = vector.broadcast %552 : vector<2x1xf32> to vector<2x64xf32>
    %554 = arith.mulf %553, %94 : vector<2x64xf32>
    %555 = vector.extract_strided_slice %509 {offsets = [0, 15], sizes = [2, 1], strides = [1, 1]} : vector<2x16xf32> to vector<2x1xf32>
    %556 = vector.broadcast %555 : vector<2x1xf32> to vector<2x64xf32>
    %557 = arith.mulf %556, %97 : vector<2x64xf32>
    %558 = arith.addf %512, %515 : vector<2x64xf32>
    %559 = arith.addf %518, %521 : vector<2x64xf32>
    %560 = arith.addf %524, %527 : vector<2x64xf32>
    %561 = arith.addf %530, %533 : vector<2x64xf32>
    %562 = arith.addf %536, %539 : vector<2x64xf32>
    %563 = arith.addf %542, %545 : vector<2x64xf32>
    %564 = arith.addf %548, %551 : vector<2x64xf32>
    %565 = arith.addf %554, %557 : vector<2x64xf32>
    %566 = arith.addf %558, %559 : vector<2x64xf32>
    %567 = arith.addf %560, %561 : vector<2x64xf32>
    %568 = arith.addf %562, %563 : vector<2x64xf32>
    %569 = arith.addf %564, %565 : vector<2x64xf32>
    %570 = arith.addf %566, %567 : vector<2x64xf32>
    %571 = arith.addf %568, %569 : vector<2x64xf32>
    %572 = arith.addf %570, %571 : vector<2x64xf32>
    %573 = vector.extract_strided_slice %48 {offsets = [5, 0, 0], sizes = [1, 2, 64], strides = [1, 1, 1]} : vector<8x2x64xf32> to vector<1x2x64xf32>
    %574 = vector.shape_cast %573 : vector<1x2x64xf32> to vector<2x64xf32>
    %575 = arith.addf %574, %572 : vector<2x64xf32>
    %576 = vector.extract_strided_slice %575 {offsets = [0, 0], sizes = [2, 48], strides = [1, 1]} : vector<2x64xf32> to vector<2x48xf32>
    %577 = arith.negf %576 : vector<2x48xf32>
    %578 = math.exp %577 : vector<2x48xf32>
    %cst_23 = arith.constant 1.000000e+00 : f32
    %579 = vector.broadcast %cst_23 : f32 to vector<2x48xf32>
    %580 = arith.addf %579, %578 : vector<2x48xf32>
    %581 = arith.divf %579, %580 : vector<2x48xf32>
    %582 = vector.extract_strided_slice %575 {offsets = [0, 48], sizes = [2, 16], strides = [1, 1]} : vector<2x64xf32> to vector<2x16xf32>
    %583 = math.tanh %582 : vector<2x16xf32>
    %584 = vector.extract_strided_slice %581 {offsets = [0, 16], sizes = [2, 16], strides = [1, 1]} : vector<2x48xf32> to vector<2x16xf32>
    %585 = arith.mulf %584, %506 : vector<2x16xf32>
    %586 = vector.extract_strided_slice %581 {offsets = [0, 0], sizes = [2, 16], strides = [1, 1]} : vector<2x48xf32> to vector<2x16xf32>
    %587 = arith.mulf %586, %583 : vector<2x16xf32>
    %588 = arith.addf %585, %587 : vector<2x16xf32>
    %589 = vector.extract_strided_slice %581 {offsets = [0, 32], sizes = [2, 16], strides = [1, 1]} : vector<2x48xf32> to vector<2x16xf32>
    %590 = math.tanh %588 : vector<2x16xf32>
    %591 = arith.mulf %589, %590 : vector<2x16xf32>
    %592 = vector.extract_strided_slice %591 {offsets = [0, 0], sizes = [2, 1], strides = [1, 1]} : vector<2x16xf32> to vector<2x1xf32>
    %593 = vector.broadcast %592 : vector<2x1xf32> to vector<2x64xf32>
    %594 = arith.mulf %593, %52 : vector<2x64xf32>
    %595 = vector.extract_strided_slice %591 {offsets = [0, 1], sizes = [2, 1], strides = [1, 1]} : vector<2x16xf32> to vector<2x1xf32>
    %596 = vector.broadcast %595 : vector<2x1xf32> to vector<2x64xf32>
    %597 = arith.mulf %596, %55 : vector<2x64xf32>
    %598 = vector.extract_strided_slice %591 {offsets = [0, 2], sizes = [2, 1], strides = [1, 1]} : vector<2x16xf32> to vector<2x1xf32>
    %599 = vector.broadcast %598 : vector<2x1xf32> to vector<2x64xf32>
    %600 = arith.mulf %599, %58 : vector<2x64xf32>
    %601 = vector.extract_strided_slice %591 {offsets = [0, 3], sizes = [2, 1], strides = [1, 1]} : vector<2x16xf32> to vector<2x1xf32>
    %602 = vector.broadcast %601 : vector<2x1xf32> to vector<2x64xf32>
    %603 = arith.mulf %602, %61 : vector<2x64xf32>
    %604 = vector.extract_strided_slice %591 {offsets = [0, 4], sizes = [2, 1], strides = [1, 1]} : vector<2x16xf32> to vector<2x1xf32>
    %605 = vector.broadcast %604 : vector<2x1xf32> to vector<2x64xf32>
    %606 = arith.mulf %605, %64 : vector<2x64xf32>
    %607 = vector.extract_strided_slice %591 {offsets = [0, 5], sizes = [2, 1], strides = [1, 1]} : vector<2x16xf32> to vector<2x1xf32>
    %608 = vector.broadcast %607 : vector<2x1xf32> to vector<2x64xf32>
    %609 = arith.mulf %608, %67 : vector<2x64xf32>
    %610 = vector.extract_strided_slice %591 {offsets = [0, 6], sizes = [2, 1], strides = [1, 1]} : vector<2x16xf32> to vector<2x1xf32>
    %611 = vector.broadcast %610 : vector<2x1xf32> to vector<2x64xf32>
    %612 = arith.mulf %611, %70 : vector<2x64xf32>
    %613 = vector.extract_strided_slice %591 {offsets = [0, 7], sizes = [2, 1], strides = [1, 1]} : vector<2x16xf32> to vector<2x1xf32>
    %614 = vector.broadcast %613 : vector<2x1xf32> to vector<2x64xf32>
    %615 = arith.mulf %614, %73 : vector<2x64xf32>
    %616 = vector.extract_strided_slice %591 {offsets = [0, 8], sizes = [2, 1], strides = [1, 1]} : vector<2x16xf32> to vector<2x1xf32>
    %617 = vector.broadcast %616 : vector<2x1xf32> to vector<2x64xf32>
    %618 = arith.mulf %617, %76 : vector<2x64xf32>
    %619 = vector.extract_strided_slice %591 {offsets = [0, 9], sizes = [2, 1], strides = [1, 1]} : vector<2x16xf32> to vector<2x1xf32>
    %620 = vector.broadcast %619 : vector<2x1xf32> to vector<2x64xf32>
    %621 = arith.mulf %620, %79 : vector<2x64xf32>
    %622 = vector.extract_strided_slice %591 {offsets = [0, 10], sizes = [2, 1], strides = [1, 1]} : vector<2x16xf32> to vector<2x1xf32>
    %623 = vector.broadcast %622 : vector<2x1xf32> to vector<2x64xf32>
    %624 = arith.mulf %623, %82 : vector<2x64xf32>
    %625 = vector.extract_strided_slice %591 {offsets = [0, 11], sizes = [2, 1], strides = [1, 1]} : vector<2x16xf32> to vector<2x1xf32>
    %626 = vector.broadcast %625 : vector<2x1xf32> to vector<2x64xf32>
    %627 = arith.mulf %626, %85 : vector<2x64xf32>
    %628 = vector.extract_strided_slice %591 {offsets = [0, 12], sizes = [2, 1], strides = [1, 1]} : vector<2x16xf32> to vector<2x1xf32>
    %629 = vector.broadcast %628 : vector<2x1xf32> to vector<2x64xf32>
    %630 = arith.mulf %629, %88 : vector<2x64xf32>
    %631 = vector.extract_strided_slice %591 {offsets = [0, 13], sizes = [2, 1], strides = [1, 1]} : vector<2x16xf32> to vector<2x1xf32>
    %632 = vector.broadcast %631 : vector<2x1xf32> to vector<2x64xf32>
    %633 = arith.mulf %632, %91 : vector<2x64xf32>
    %634 = vector.extract_strided_slice %591 {offsets = [0, 14], sizes = [2, 1], strides = [1, 1]} : vector<2x16xf32> to vector<2x1xf32>
    %635 = vector.broadcast %634 : vector<2x1xf32> to vector<2x64xf32>
    %636 = arith.mulf %635, %94 : vector<2x64xf32>
    %637 = vector.extract_strided_slice %591 {offsets = [0, 15], sizes = [2, 1], strides = [1, 1]} : vector<2x16xf32> to vector<2x1xf32>
    %638 = vector.broadcast %637 : vector<2x1xf32> to vector<2x64xf32>
    %639 = arith.mulf %638, %97 : vector<2x64xf32>
    %640 = arith.addf %594, %597 : vector<2x64xf32>
    %641 = arith.addf %600, %603 : vector<2x64xf32>
    %642 = arith.addf %606, %609 : vector<2x64xf32>
    %643 = arith.addf %612, %615 : vector<2x64xf32>
    %644 = arith.addf %618, %621 : vector<2x64xf32>
    %645 = arith.addf %624, %627 : vector<2x64xf32>
    %646 = arith.addf %630, %633 : vector<2x64xf32>
    %647 = arith.addf %636, %639 : vector<2x64xf32>
    %648 = arith.addf %640, %641 : vector<2x64xf32>
    %649 = arith.addf %642, %643 : vector<2x64xf32>
    %650 = arith.addf %644, %645 : vector<2x64xf32>
    %651 = arith.addf %646, %647 : vector<2x64xf32>
    %652 = arith.addf %648, %649 : vector<2x64xf32>
    %653 = arith.addf %650, %651 : vector<2x64xf32>
    %654 = arith.addf %652, %653 : vector<2x64xf32>
    %655 = vector.extract_strided_slice %48 {offsets = [6, 0, 0], sizes = [1, 2, 64], strides = [1, 1, 1]} : vector<8x2x64xf32> to vector<1x2x64xf32>
    %656 = vector.shape_cast %655 : vector<1x2x64xf32> to vector<2x64xf32>
    %657 = arith.addf %656, %654 : vector<2x64xf32>
    %658 = vector.extract_strided_slice %657 {offsets = [0, 0], sizes = [2, 48], strides = [1, 1]} : vector<2x64xf32> to vector<2x48xf32>
    %659 = arith.negf %658 : vector<2x48xf32>
    %660 = math.exp %659 : vector<2x48xf32>
    %cst_24 = arith.constant 1.000000e+00 : f32
    %661 = vector.broadcast %cst_24 : f32 to vector<2x48xf32>
    %662 = arith.addf %661, %660 : vector<2x48xf32>
    %663 = arith.divf %661, %662 : vector<2x48xf32>
    %664 = vector.extract_strided_slice %657 {offsets = [0, 48], sizes = [2, 16], strides = [1, 1]} : vector<2x64xf32> to vector<2x16xf32>
    %665 = math.tanh %664 : vector<2x16xf32>
    %666 = vector.extract_strided_slice %663 {offsets = [0, 16], sizes = [2, 16], strides = [1, 1]} : vector<2x48xf32> to vector<2x16xf32>
    %667 = arith.mulf %666, %588 : vector<2x16xf32>
    %668 = vector.extract_strided_slice %663 {offsets = [0, 0], sizes = [2, 16], strides = [1, 1]} : vector<2x48xf32> to vector<2x16xf32>
    %669 = arith.mulf %668, %665 : vector<2x16xf32>
    %670 = arith.addf %667, %669 : vector<2x16xf32>
    %671 = vector.extract_strided_slice %663 {offsets = [0, 32], sizes = [2, 16], strides = [1, 1]} : vector<2x48xf32> to vector<2x16xf32>
    %672 = math.tanh %670 : vector<2x16xf32>
    %673 = arith.mulf %671, %672 : vector<2x16xf32>
    %674 = vector.extract_strided_slice %673 {offsets = [0, 0], sizes = [2, 1], strides = [1, 1]} : vector<2x16xf32> to vector<2x1xf32>
    %675 = vector.broadcast %674 : vector<2x1xf32> to vector<2x64xf32>
    %676 = arith.mulf %675, %52 : vector<2x64xf32>
    %677 = vector.extract_strided_slice %673 {offsets = [0, 1], sizes = [2, 1], strides = [1, 1]} : vector<2x16xf32> to vector<2x1xf32>
    %678 = vector.broadcast %677 : vector<2x1xf32> to vector<2x64xf32>
    %679 = arith.mulf %678, %55 : vector<2x64xf32>
    %680 = vector.extract_strided_slice %673 {offsets = [0, 2], sizes = [2, 1], strides = [1, 1]} : vector<2x16xf32> to vector<2x1xf32>
    %681 = vector.broadcast %680 : vector<2x1xf32> to vector<2x64xf32>
    %682 = arith.mulf %681, %58 : vector<2x64xf32>
    %683 = vector.extract_strided_slice %673 {offsets = [0, 3], sizes = [2, 1], strides = [1, 1]} : vector<2x16xf32> to vector<2x1xf32>
    %684 = vector.broadcast %683 : vector<2x1xf32> to vector<2x64xf32>
    %685 = arith.mulf %684, %61 : vector<2x64xf32>
    %686 = vector.extract_strided_slice %673 {offsets = [0, 4], sizes = [2, 1], strides = [1, 1]} : vector<2x16xf32> to vector<2x1xf32>
    %687 = vector.broadcast %686 : vector<2x1xf32> to vector<2x64xf32>
    %688 = arith.mulf %687, %64 : vector<2x64xf32>
    %689 = vector.extract_strided_slice %673 {offsets = [0, 5], sizes = [2, 1], strides = [1, 1]} : vector<2x16xf32> to vector<2x1xf32>
    %690 = vector.broadcast %689 : vector<2x1xf32> to vector<2x64xf32>
    %691 = arith.mulf %690, %67 : vector<2x64xf32>
    %692 = vector.extract_strided_slice %673 {offsets = [0, 6], sizes = [2, 1], strides = [1, 1]} : vector<2x16xf32> to vector<2x1xf32>
    %693 = vector.broadcast %692 : vector<2x1xf32> to vector<2x64xf32>
    %694 = arith.mulf %693, %70 : vector<2x64xf32>
    %695 = vector.extract_strided_slice %673 {offsets = [0, 7], sizes = [2, 1], strides = [1, 1]} : vector<2x16xf32> to vector<2x1xf32>
    %696 = vector.broadcast %695 : vector<2x1xf32> to vector<2x64xf32>
    %697 = arith.mulf %696, %73 : vector<2x64xf32>
    %698 = vector.extract_strided_slice %673 {offsets = [0, 8], sizes = [2, 1], strides = [1, 1]} : vector<2x16xf32> to vector<2x1xf32>
    %699 = vector.broadcast %698 : vector<2x1xf32> to vector<2x64xf32>
    %700 = arith.mulf %699, %76 : vector<2x64xf32>
    %701 = vector.extract_strided_slice %673 {offsets = [0, 9], sizes = [2, 1], strides = [1, 1]} : vector<2x16xf32> to vector<2x1xf32>
    %702 = vector.broadcast %701 : vector<2x1xf32> to vector<2x64xf32>
    %703 = arith.mulf %702, %79 : vector<2x64xf32>
    %704 = vector.extract_strided_slice %673 {offsets = [0, 10], sizes = [2, 1], strides = [1, 1]} : vector<2x16xf32> to vector<2x1xf32>
    %705 = vector.broadcast %704 : vector<2x1xf32> to vector<2x64xf32>
    %706 = arith.mulf %705, %82 : vector<2x64xf32>
    %707 = vector.extract_strided_slice %673 {offsets = [0, 11], sizes = [2, 1], strides = [1, 1]} : vector<2x16xf32> to vector<2x1xf32>
    %708 = vector.broadcast %707 : vector<2x1xf32> to vector<2x64xf32>
    %709 = arith.mulf %708, %85 : vector<2x64xf32>
    %710 = vector.extract_strided_slice %673 {offsets = [0, 12], sizes = [2, 1], strides = [1, 1]} : vector<2x16xf32> to vector<2x1xf32>
    %711 = vector.broadcast %710 : vector<2x1xf32> to vector<2x64xf32>
    %712 = arith.mulf %711, %88 : vector<2x64xf32>
    %713 = vector.extract_strided_slice %673 {offsets = [0, 13], sizes = [2, 1], strides = [1, 1]} : vector<2x16xf32> to vector<2x1xf32>
    %714 = vector.broadcast %713 : vector<2x1xf32> to vector<2x64xf32>
    %715 = arith.mulf %714, %91 : vector<2x64xf32>
    %716 = vector.extract_strided_slice %673 {offsets = [0, 14], sizes = [2, 1], strides = [1, 1]} : vector<2x16xf32> to vector<2x1xf32>
    %717 = vector.broadcast %716 : vector<2x1xf32> to vector<2x64xf32>
    %718 = arith.mulf %717, %94 : vector<2x64xf32>
    %719 = vector.extract_strided_slice %673 {offsets = [0, 15], sizes = [2, 1], strides = [1, 1]} : vector<2x16xf32> to vector<2x1xf32>
    %720 = vector.broadcast %719 : vector<2x1xf32> to vector<2x64xf32>
    %721 = arith.mulf %720, %97 : vector<2x64xf32>
    %722 = arith.addf %676, %679 : vector<2x64xf32>
    %723 = arith.addf %682, %685 : vector<2x64xf32>
    %724 = arith.addf %688, %691 : vector<2x64xf32>
    %725 = arith.addf %694, %697 : vector<2x64xf32>
    %726 = arith.addf %700, %703 : vector<2x64xf32>
    %727 = arith.addf %706, %709 : vector<2x64xf32>
    %728 = arith.addf %712, %715 : vector<2x64xf32>
    %729 = arith.addf %718, %721 : vector<2x64xf32>
    %730 = arith.addf %722, %723 : vector<2x64xf32>
    %731 = arith.addf %724, %725 : vector<2x64xf32>
    %732 = arith.addf %726, %727 : vector<2x64xf32>
    %733 = arith.addf %728, %729 : vector<2x64xf32>
    %734 = arith.addf %730, %731 : vector<2x64xf32>
    %735 = arith.addf %732, %733 : vector<2x64xf32>
    %736 = arith.addf %734, %735 : vector<2x64xf32>
    %737 = vector.extract_strided_slice %48 {offsets = [7, 0, 0], sizes = [1, 2, 64], strides = [1, 1, 1]} : vector<8x2x64xf32> to vector<1x2x64xf32>
    %738 = vector.shape_cast %737 : vector<1x2x64xf32> to vector<2x64xf32>
    %739 = arith.addf %738, %736 : vector<2x64xf32>
    %740 = vector.extract_strided_slice %739 {offsets = [0, 0], sizes = [2, 48], strides = [1, 1]} : vector<2x64xf32> to vector<2x48xf32>
    %741 = arith.negf %740 : vector<2x48xf32>
    %742 = math.exp %741 : vector<2x48xf32>
    %cst_25 = arith.constant 1.000000e+00 : f32
    %743 = vector.broadcast %cst_25 : f32 to vector<2x48xf32>
    %744 = arith.addf %743, %742 : vector<2x48xf32>
    %745 = arith.divf %743, %744 : vector<2x48xf32>
    %746 = vector.extract_strided_slice %739 {offsets = [0, 48], sizes = [2, 16], strides = [1, 1]} : vector<2x64xf32> to vector<2x16xf32>
    %747 = math.tanh %746 : vector<2x16xf32>
    %748 = vector.extract_strided_slice %745 {offsets = [0, 16], sizes = [2, 16], strides = [1, 1]} : vector<2x48xf32> to vector<2x16xf32>
    %749 = arith.mulf %748, %670 : vector<2x16xf32>
    %750 = vector.extract_strided_slice %745 {offsets = [0, 0], sizes = [2, 16], strides = [1, 1]} : vector<2x48xf32> to vector<2x16xf32>
    %751 = arith.mulf %750, %747 : vector<2x16xf32>
    %752 = arith.addf %749, %751 : vector<2x16xf32>
    %753 = vector.extract_strided_slice %745 {offsets = [0, 32], sizes = [2, 16], strides = [1, 1]} : vector<2x48xf32> to vector<2x16xf32>
    %754 = math.tanh %752 : vector<2x16xf32>
    %755 = arith.mulf %753, %754 : vector<2x16xf32>
    %c40_26 = arith.constant 40 : index
    %c0_27 = arith.constant 0 : index
    %756 = vector.load %arg3[%c40_26, %c0_27] : memref<48x128xf32, #tpu.memory_space<vmem>>, vector<1x128xf32>
    %c0_28 = arith.constant 0 : index
    %c0_29 = arith.constant 0 : index
    %757 = vector.load %arg3[%c0_28, %c0_29] : memref<48x128xf32, #tpu.memory_space<vmem>>, vector<24x128xf32>
    %cst_30 = arith.constant dense<0.000000e+00> : vector<2x128xf32>
    %758 = tpu.matmul %38, %757, %cst_30 {dimension_numbers = #tpu.dot_dimension_numbers<[1], [0], [0], [1], [0, 0, 1, 1], [], []>} : vector<2x24xf32>, vector<24x128xf32>, vector<2x128xf32> -> vector<2x128xf32>
    %c24 = arith.constant 24 : index
    %c0_31 = arith.constant 0 : index
    %759 = vector.load %arg3[%c24, %c0_31] : memref<48x128xf32, #tpu.memory_space<vmem>>, vector<16x128xf32>
    %cst_32 = arith.constant dense<0.000000e+00> : vector<2x128xf32>
    %760 = tpu.matmul %755, %759, %cst_32 {dimension_numbers = #tpu.dot_dimension_numbers<[1], [0], [0], [1], [0, 0, 1, 1], [], []>} : vector<2x16xf32>, vector<16x128xf32>, vector<2x128xf32> -> vector<2x128xf32>
    %761 = arith.addf %758, %760 : vector<2x128xf32>
    %762 = vector.broadcast %756 : vector<1x128xf32> to vector<2x128xf32>
    %763 = arith.addf %761, %762 : vector<2x128xf32>
    %cst_33 = arith.constant dense<0xFF800000> : vector<2xf32>
    %764 = vector.multi_reduction <maximumf>, %763, %cst_33 [1] : vector<2x128xf32> to vector<2xf32>
    %765 = vector.shape_cast %764 : vector<2xf32> to vector<2x1xf32>
    %766 = vector.broadcast %765 : vector<2x1xf32> to vector<2x128xf32>
    %767 = arith.subf %763, %766 : vector<2x128xf32>
    %768 = math.exp %767 : vector<2x128xf32>
    %cst_34 = arith.constant dense<0.000000e+00> : vector<2xf32>
    %769 = vector.multi_reduction <add>, %768, %cst_34 [1] : vector<2x128xf32> to vector<2xf32>
    %770 = vector.shape_cast %769 : vector<2xf32> to vector<2x1xf32>
    %771 = math.log %770 : vector<2x1xf32>
    %772 = arith.addf %765, %771 : vector<2x1xf32>
    %773 = vector.broadcast %772 : vector<2x1xf32> to vector<2x128xf32>
    %774 = arith.subf %763, %773 : vector<2x128xf32>
    %c0_35 = arith.constant 0 : index
    %c0_36 = arith.constant 0 : index
    %775 = vector.load %arg4[%c0_35, %c0_36] : memref<2x128xf32, #tpu.memory_space<vmem>>, vector<2x128xf32>
    tpu.vector_store %arg4[%c0_35, %c0_36], %774 {strides = array<i32>} : memref<2x128xf32, #tpu.memory_space<vmem>>, vector<2x128xf32>,
    return
  }
}

</mosaic_0001>

<llo_original>
// kernel: _forward_impl.1
$region0: #{_forward_impl.1}
  #allocation0 [shape = 'u32[]', space=smem, size = 0x4, offset = 0x4, fixed_abs, tag = 'smem constant byte address 0x4 - core index']
  #allocation1 [shape = 'u32[144,128]{1,0:T(1,128)}', space=vmem, size = 0x12000, scoped, tag = 'internal scratch']
  %s0 = inlined_call_operand.vmem [shape: f32[32,40], index: 0, kind: input, shape index: {}]
  %s1 = inlined_call_operand.vmem [shape: f32[8,2,1], index: 1, kind: input, shape index: {}]
  %s2 = inlined_call_operand.vmem [shape: f32[80,128], index: 2, kind: input, shape index: {}]
  %s3 = inlined_call_operand.vmem [shape: f32[48,128], index: 3, kind: input, shape index: {}]
  %s4 = inlined_call_operand.hbm [shape: f32[2,128], index: 4, kind: output, shape index: {}]
  %s5 = sld [smem:[#allocation0]]
  $region26: #{_forward_impl.1} parent=0
    _
  %s7 = ssub.s32 1, %s5
  %s8 = scalar_select 0, %s7, %s5
  $region1: #{_forward_impl.1} parent=0
    #allocation2 [shape = 'u8[1024]{0}', space=vmem, size = 0x400, scoped, tag = 'output window, operand 0, single buffered']
    #allocation3 [shape = 's32[1]{0}', space=sflag, size = 0x4, scoped, tag = 'scoped memory for _forward_impl.1']
    %9 = vsyncpa [#allocation3], 0
    // Predicated region
    $region2: #{_forward_impl.1} parent=1 // pred_check
      _
    $region3: #{_forward_impl.1} parent=1 // pred_check_branch
      %11 = sbr.rel (0) target = $region5
    $region4: #{_forward_impl.1} parent=1 // pred_region
      _
    $region5: #{_forward_impl.1} parent=1 // pred_fallthru
      _
    // Predicated region
    $region6: #{_forward_impl.1} parent=1 // pred_check
      _
    $region7: #{_forward_impl.1} parent=1 // pred_check_branch
      %13 = sbr.rel (0) target = $region9
    $region8: #{_forward_impl.1} parent=1 // pred_region
      _
    $region9: #{_forward_impl.1} parent=1 // pred_fallthru
      _
    // Predicated region
    $region10: #{_forward_impl.1} parent=1 // pred_check
      _
    $region11: #{_forward_impl.1} parent=1 // pred_check_branch
      %15 = sbr.rel (0) target = $region13
    $region12: #{_forward_impl.1} parent=1 // pred_region
      _
    $region13: #{_forward_impl.1} parent=1 // pred_fallthru
      _
    // Predicated region
    $region14: #{_forward_impl.1} parent=1 // pred_check
      _
    $region15: #{_forward_impl.1} parent=1 // pred_check_branch
      %17 = sbr.rel (0) target = $region17
    $region16: #{_forward_impl.1} parent=1 // pred_region
      _
    $region17: #{_forward_impl.1} parent=1 // pred_fallthru
      _
    %v18 = vld [vmem:[%s0] sm:$0xff]
    %v19 = vld [vmem:[%s0 + $0x8] sm:$0xff]
    %v20 = vld [vmem:[%s0 + $0x10] sm:$0xff]
    %v21 = vld [vmem:[%s0 + $0x18] sm:$0xff]
    %v22 = vld [vmem:[%s2] sm:$0xff]
    %v23 = vld [vmem:[%s2 + $0x8] sm:$0xff]
    %v24 = vld [vmem:[%s2 + $0x10] sm:$0xff]
    %v25 = vld [vmem:[%s2 + $0x18] sm:$0xff]
    %v26 = vld [vmem:[%s2 + $0x20] sm:$0xff]
    %v27 = vld [vmem:[%s2 + $0x38] sm:$0x1]
    %v28 = vlaneseq
    %v29 = vshrl.u32 %v28, 7
    %v30 = vsub.s32 0, %v29
    %v31 = vrot.slane %v27, %v30
    %vm32 = vcmask 326656
    %v34 = vsel %vm32, %v18, 0
    %v37 = vsel %vm32, %v19, 0
    %v40 = vsel %vm32, %v20, 0
    %v43 = vsel %vm32, %v21, 0
    %45 = vmatprep.subr.mxu0 0.0
    %46 = vmatpush1.msra.mxu0 %v22
    %47 = vmatprep.subr.mxu0 0.0
    %48 = vmatpush1.msra.mxu0 %v23
    %49 = vmatprep.subr.mxu0 0.0
    %50 = vmatpush1.msra.mxu0 %v24
    %51 = vmatprep.subr.mxu0 0.0
    %52 = vmatpush1.msra.mxu0 %v25
    %53 = vmatprep.subr.mxu0 0.0
    %54 = vmatpush1.msra.mxu0 %v26
    %55 = vmatprep.subr.mxu0 0.0
    %56 = vmatpush1.msra.mxu0 0.0
    %57 = vmatprep.subr.mxu0 0.0
    %58 = vmatpush1.msra.mxu0 0.0
    %59 = vmatprep.subr.mxu0 0.0
    %60 = vmatpush1.msra.mxu0 0.0
    %61 = vmatprep.subr.mxu0 0.0
    %62 = vmatpush1.msra.mxu0 0.0
    %63 = vmatprep.subr.mxu0 0.0
    %64 = vmatpush1.msra.mxu0 0.0
    %65 = vmatprep.subr.mxu0 0.0
    %66 = vmatpush1.msra.mxu0 0.0
    %67 = vmatprep.subr.mxu0 0.0
    %68 = vmatpush1.msra.mxu0 0.0
    %69 = vmatprep.subr.mxu0 0.0
    %70 = vmatpush1.msra.mxu0 0.0
    %71 = vmatprep.subr.mxu0 0.0
    %72 = vmatpush1.msra.mxu0 0.0
    %73 = vmatprep.subr.mxu0 0.0
    %74 = vmatpush1.msra.mxu0 0.0
    %75 = vmatprep.subr.mxu0 0.0
    %76 = vmatpush1.msra.mxu0 0.0
    %77 = vmatprep.subr.mxu0 0.0
    %78 = vmatpush1.msra.mxu0 0.0
    %79 = vmatprep.subr.mxu0 0.0
    %80 = vmatpush1.msra.mxu0 0.0
    %81 = vmatprep.subr.mxu0 0.0
    %82 = vmatpush1.msra.mxu0 0.0
    %83 = vmatprep.subr.mxu0 0.0
    %84 = vmatpush1.msra.mxu0 0.0
    %85 = vmatprep.subr.mxu0 0.0
    %86 = vmatpush1.msra.mxu0 0.0
    %87 = vmatprep.subr.mxu0 0.0
    %88 = vmatpush1.msra.mxu0 0.0
    %89 = vmatprep.subr.mxu0 0.0
    %90 = vmatpush1.msra.mxu0 0.0
    %91 = vmatprep.subr.mxu0 0.0
    %92 = vmatpush1.msra.mxu0 0.0
    %93 = vmatprep.subr.mxu0 0.0
    %94 = vmatpush1.msra.mxu0 0.0
    %95 = vmatprep.subr.mxu0 0.0
    %96 = vmatpush1.msra.mxu0 0.0
    %97 = vmatprep.subr.mxu0 0.0
    %98 = vmatpush1.msra.mxu0 0.0
    %99 = vmatprep.subr.mxu0 0.0
    %100 = vmatpush1.msra.mxu0 0.0
    %101 = vmatprep.subr.mxu0 0.0
    %102 = vmatpush1.msra.mxu0 0.0
    %103 = vmatprep.subr.mxu0 0.0
    %104 = vmatpush1.msra.mxu0 0.0
    %105 = vmatprep.subr.mxu0 0.0
    %106 = vmatpush1.msra.mxu0 0.0
    %107 = vmatprep.subr.mxu0 0.0
    %108 = vmatpush1.msra.mxu0 0.0
    %109 = vmatprep.mubr.f32.mxu0 0.0
    %110 = vmatmul.mubr.f32.gmra.mrb[0].mxu0 %v34
    %v111 = vpop.f32.mrb[0].mxu0
    %v112 = vadd.f32 %v31, %v111
    %v113 = vpop.f32.mrb[0].mxu0
    %114 = vmatprep.mubr.f32.mxu0 0.0
    %115 = vmatmul.mubr.f32.gmra.mrb[0].mxu0 %v37
    %v116 = vpop.f32.mrb[0].mxu0
    %v117 = vadd.f32 %v31, %v116
    %v118 = vpop.f32.mrb[0].mxu0
    %119 = vmatprep.mubr.f32.mxu0 0.0
    %120 = vmatmul.mubr.f32.gmra.mrb[0].mxu0 %v40
    %v121 = vpop.f32.mrb[0].mxu0
    %v122 = vadd.f32 %v31, %v121
    %v123 = vpop.f32.mrb[0].mxu0
    %124 = vmatprep.mubr.f32.mxu0 0.0
    %125 = vmatmul.mubr.f32.gmra.mrb[0].mxu0 %v43
    %v126 = vpop.f32.mrb[0].mxu0
    %v127 = vadd.f32 %v31, %v126
    %v128 = vpop.f32.mrb[0].mxu0
    %129 = vdwg.mxu0
    %v130 = vmax.f32 %v112, 0.0
    %v131 = vmax.f32 %v117, 0.0
    %v132 = vmax.f32 %v122, 0.0
    %v133 = vmax.f32 %v127, 0.0
    %v134 = vlaneseq
    %v135 = vshrl.u32 %v134, 7
    %v136 = vadd.s32 %v135, 8
    %v137 = vlaneseq
    %v138 = vand.u32 %v137, 127
    %vm139 = vcmp.ge.s32.totalorder %v138, 0
    %vm140 = vcmp.lt.s32.totalorder %v138, 8
    %vm141 = vmand %vm139, %vm140
    %v142 = vsel %vm141, 14, 0
    %vm143 = vcmp.ge.s32.totalorder %v138, 8
    %vm144 = vcmp.lt.s32.totalorder %v138, 16
    %vm145 = vmand %vm143, %vm144
    %v146 = vsel %vm145, 13, %v142
    %vm147 = vcmp.ge.s32.totalorder %v138, 16
    %vm148 = vcmp.lt.s32.totalorder %v138, 24
    %vm149 = vmand %vm147, %vm148
    %v150 = vsel %vm149, 12, %v146
    %vm151 = vcmp.lt.s32.totalorder %v135, %v150
    %vm152 = vcmp.lt.s32.totalorder %v136, %v150
    %v153 = vsel %vm151, 1, 0
    %v154 = vsel %vm152, 1, 0
    %vm155 = vcmp.eq.s32.totalorder %v153, 1
    %vm156 = vcmp.eq.s32.totalorder %v154, 1
    %v157 = vsel %vm155, %v130, 0.0
    %v158 = vsel %vm156, %v131, 0.0
    %v159 = vsel %vm155, %v132, 0.0
    %v160 = vsel %vm156, %v133, 0.0
    %vm161 = vcmask 195584
    %v162 = vsel %vm161, %v157, -inf
    %v163 = vsel %vm161, %v158, -inf
    %v164 = vmax.f32 %v162, %v163
    %v165 = vrot.slane %v164, 4
    %v166 = vmax.f32 %v164, %v165
    %v167 = vrot.slane %v166, 2
    %v168 = vmax.f32 %v166, %v167
    %v169 = vrot.slane %v168, 1
    %v170 = vmax.f32 %v168, %v169
    %v171 = vsel %vm161, %v159, -inf
    %v172 = vsel %vm161, %v160, -inf
    %v173 = vmax.f32 %v171, %v172
    %v174 = vrot.slane %v173, 4
    %v175 = vmax.f32 %v173, %v174
    %v176 = vrot.slane %v175, 2
    %v177 = vmax.f32 %v175, %v176
    %v178 = vrot.slane %v177, 1
    %v179 = vmax.f32 %v177, %v178
    %v180 = vld [vmem:[%s1] sm:$0x3]
    %v181 = vld [vmem:[%s1 + $0x2] sm:$0x3]
    %v182 = vld [vmem:[%s1 + $0x4] sm:$0x3]
    %v183 = vld [vmem:[%s1 + $0x6] sm:$0x3]
    %v184 = vld [vmem:[%s1 + $0x8] sm:$0x3]
    %v185 = vld [vmem:[%s1 + $0xa] sm:$0x3]
    %v186 = vld [vmem:[%s1 + $0xc] sm:$0x3]
    %v187 = vld [vmem:[%s1 + $0xe] sm:$0x3]
    %v188 = vld [vmem:[%s2 + $0x40] sm:$0x1]
    %v189 = vld [vmem:[%s2 + $0x48] sm:$0x1]
    %191 = vset.pattern.permute.xlu0 0
    %192 = vperm.xlu0 %191, %v180
    %v193 = vpop.permute.xlu0 %192
    %196 = vset.pattern.permute.xlu0 0
    %197 = vperm.xlu0 %196, %v181
    %v198 = vpop.permute.xlu0 %197
    %201 = vset.pattern.permute.xlu0 0
    %202 = vperm.xlu0 %201, %v182
    %v203 = vpop.permute.xlu0 %202
    %206 = vset.pattern.permute.xlu0 0
    %207 = vperm.xlu0 %206, %v183
    %v208 = vpop.permute.xlu0 %207
    %211 = vset.pattern.permute.xlu0 0
    %212 = vperm.xlu0 %211, %v184
    %v213 = vpop.permute.xlu0 %212
    %216 = vset.pattern.permute.xlu0 0
    %217 = vperm.xlu0 %216, %v185
    %v218 = vpop.permute.xlu0 %217
    %221 = vset.pattern.permute.xlu0 0
    %222 = vperm.xlu0 %221, %v186
    %v223 = vpop.permute.xlu0 %222
    %226 = vset.pattern.permute.xlu0 0
    %227 = vperm.xlu0 %226, %v187
    %v228 = vpop.permute.xlu0 %227
    %v230 = vlaneseq
    %v231 = vshrl.u32 %v230, 7
    %v232 = vsub.s32 0, %v231
    %v233 = vrot.slane %v188, %v232
    %v234 = vmul.f32 %v193, %v233
    %v235 = vmul.f32 %v198, %v233
    %v236 = vmul.f32 %v203, %v233
    %v237 = vmul.f32 %v208, %v233
    %v238 = vmul.f32 %v213, %v233
    %v239 = vmul.f32 %v218, %v233
    %v240 = vmul.f32 %v223, %v233
    %v241 = vmul.f32 %v228, %v233
    %v242 = vlaneseq
    %v243 = vshrl.u32 %v242, 7
    %v244 = vsub.s32 0, %v243
    %v245 = vrot.slane %v189, %v244
    %v246 = vadd.f32 %v234, %v245
    %v247 = vadd.f32 %v235, %v245
    %v248 = vadd.f32 %v236, %v245
    %v249 = vadd.f32 %v237, %v245
    %v250 = vadd.f32 %v238, %v245
    %v251 = vadd.f32 %v239, %v245
    %v252 = vadd.f32 %v240, %v245
    %v253 = vadd.f32 %v241, %v245
    %v254 = vld [vmem:[%s2 + $0x28] sm:$0xff]
    %v255 = vld [vmem:[%s2 + $0x30] sm:$0xff]
    %v256 = vlaneseq
    %v257 = vshrl.u32 %v256, 7
    %v258 = vsub.s32 0, %v257
    %v259 = vrot.slane %v254, %v258
    %v260 = vlaneseq
    %v261 = vshrl.u32 %v260, 7
    %v262 = vsub.s32 1, %v261
    %v263 = vrot.slane %v254, %v262
    %v264 = vlaneseq
    %v265 = vshrl.u32 %v264, 7
    %v266 = vsub.s32 2, %v265
    %v267 = vrot.slane %v254, %v266
    %v268 = vlaneseq
    %v269 = vshrl.u32 %v268, 7
    %v270 = vsub.s32 3, %v269
    %v271 = vrot.slane %v254, %v270
    %v272 = vlaneseq
    %v273 = vshrl.u32 %v272, 7
    %v274 = vsub.s32 4, %v273
    %v275 = vrot.slane %v254, %v274
    %v276 = vlaneseq
    %v277 = vshrl.u32 %v276, 7
    %v278 = vsub.s32 5, %v277
    %v279 = vrot.slane %v254, %v278
    %v280 = vlaneseq
    %v281 = vshrl.u32 %v280, 7
    %v282 = vsub.s32 6, %v281
    %v283 = vrot.slane %v254, %v282
    %v284 = vlaneseq
    %v285 = vshrl.u32 %v284, 7
    %v286 = vsub.s32 7, %v285
    %v287 = vrot.slane %v254, %v286
    %v288 = vlaneseq
    %v289 = vshrl.u32 %v288, 7
    %v290 = vsub.s32 0, %v289
    %v291 = vrot.slane %v255, %v290
    %v292 = vlaneseq
    %v293 = vshrl.u32 %v292, 7
    %v294 = vsub.s32 1, %v293
    %v295 = vrot.slane %v255, %v294
    %v296 = vlaneseq
    %v297 = vshrl.u32 %v296, 7
    %v298 = vsub.s32 2, %v297
    %v299 = vrot.slane %v255, %v298
    %v300 = vlaneseq
    %v301 = vshrl.u32 %v300, 7
    %v302 = vsub.s32 3, %v301
    %v303 = vrot.slane %v255, %v302
    %v304 = vlaneseq
    %v305 = vshrl.u32 %v304, 7
    %v306 = vsub.s32 4, %v305
    %v307 = vrot.slane %v255, %v306
    %v308 = vlaneseq
    %v309 = vshrl.u32 %v308, 7
    %v310 = vsub.s32 5, %v309
    %v311 = vrot.slane %v255, %v310
    %v312 = vlaneseq
    %v313 = vshrl.u32 %v312, 7
    %v314 = vsub.s32 6, %v313
    %v315 = vrot.slane %v255, %v314
    %v316 = vlaneseq
    %v317 = vshrl.u32 %v316, 7
    %v318 = vsub.s32 7, %v317
    %v319 = vrot.slane %v255, %v318
    %v320 = vmul.f32 %v259, 0.0
    %v321 = vmul.f32 %v263, 0.0
    %v322 = vmul.f32 %v267, 0.0
    %v323 = vmul.f32 %v271, 0.0
    %v324 = vmul.f32 %v275, 0.0
    %v325 = vmul.f32 %v279, 0.0
    %v326 = vmul.f32 %v283, 0.0
    %v327 = vmul.f32 %v287, 0.0
    %v328 = vmul.f32 %v291, 0.0
    %v329 = vmul.f32 %v295, 0.0
    %v330 = vmul.f32 %v299, 0.0
    %v331 = vmul.f32 %v303, 0.0
    %v332 = vmul.f32 %v307, 0.0
    %v333 = vmul.f32 %v311, 0.0
    %v334 = vmul.f32 %v315, 0.0
    %v335 = vmul.f32 %v319, 0.0
    %v336 = vadd.f32 %v320, %v321
    %v337 = vadd.f32 %v322, %v323
    %v338 = vadd.f32 %v324, %v325
    %v339 = vadd.f32 %v326, %v327
    %v340 = vadd.f32 %v328, %v329
    %v341 = vadd.f32 %v330, %v331
    %v342 = vadd.f32 %v332, %v333
    %v343 = vadd.f32 %v334, %v335
    %v344 = vadd.f32 %v336, %v337
    %v345 = vadd.f32 %v338, %v339
    %v346 = vadd.f32 %v340, %v341
    %v347 = vadd.f32 %v342, %v343
    %v348 = vadd.f32 %v344, %v345
    %v349 = vadd.f32 %v346, %v347
    %v350 = vadd.f32 %v348, %v349
    %v351 = vadd.f32 %v246, %v350
    %v352 = vxor.u32 %v351, 2147483648
    %v353 = vmul.f32 %v352, 1.442695
    %v354 = vpow.pop %v353
    %v355 = vadd.f32 %v354, 1.0
    %v356 = vrcp.pop %v355
    %v357 = vmul.f32 1.0, %v356
    %v358 = vtanh.pop %v351
    %v359 = vmul.f32 %v357, 0.0
    %361 = vrot.lane.b32.xlu0 %v358, 80
    %v362 = vpop.permute.xlu0 %361
    %v364 = vmul.f32 %v357, %v362
    %366 = vrot.lane.b32.xlu0 %v364, 16
    %v367 = vpop.permute.xlu0 %366
    %v369 = vadd.f32 %v359, %v367
    %v370 = vtanh.pop %v369
    %372 = vrot.lane.b32.xlu0 %v370, 16
    %v373 = vpop.permute.xlu0 %372
    %v375 = vmul.f32 %v357, %v373
    %377 = vset.pattern.permute.xlu0 32
    %378 = vperm.xlu0 %377, %v375
    %v379 = vpop.permute.xlu0 %378
    %v381 = vmul.f32 %v379, %v259
    %382 = vset.pattern.permute.xlu0 33
    %383 = vperm.xlu0 %382, %v375
    %v384 = vpop.permute.xlu0 %383
    %v386 = vmul.f32 %v384, %v263
    %387 = vset.pattern.permute.xlu0 34
    %388 = vperm.xlu0 %387, %v375
    %v389 = vpop.permute.xlu0 %388
    %v391 = vmul.f32 %v389, %v267
    %392 = vset.pattern.permute.xlu0 35
    %393 = vperm.xlu0 %392, %v375
    %v394 = vpop.permute.xlu0 %393
    %v396 = vmul.f32 %v394, %v271
    %397 = vset.pattern.permute.xlu0 36
    %398 = vperm.xlu0 %397, %v375
    %v399 = vpop.permute.xlu0 %398
    %v401 = vmul.f32 %v399, %v275
    %402 = vset.pattern.permute.xlu0 37
    %403 = vperm.xlu0 %402, %v375
    %v404 = vpop.permute.xlu0 %403
    %v406 = vmul.f32 %v404, %v279
    %407 = vset.pattern.permute.xlu0 38
    %408 = vperm.xlu0 %407, %v375
    %v409 = vpop.permute.xlu0 %408
    %v411 = vmul.f32 %v409, %v283
    %412 = vset.pattern.permute.xlu0 39
    %413 = vperm.xlu0 %412, %v375
    %v414 = vpop.permute.xlu0 %413
    %v416 = vmul.f32 %v414, %v287
    %417 = vset.pattern.permute.xlu0 40
    %418 = vperm.xlu0 %417, %v375
    %v419 = vpop.permute.xlu0 %418
    %v421 = vmul.f32 %v419, %v291
    %422 = vset.pattern.permute.xlu0 41
    %423 = vperm.xlu0 %422, %v375
    %v424 = vpop.permute.xlu0 %423
    %v426 = vmul.f32 %v424, %v295
    %427 = vset.pattern.permute.xlu0 42
    %428 = vperm.xlu0 %427, %v375
    %v429 = vpop.permute.xlu0 %428
    %v431 = vmul.f32 %v429, %v299
    %432 = vset.pattern.permute.xlu0 43
    %433 = vperm.xlu0 %432, %v375
    %v434 = vpop.permute.xlu0 %433
    %v436 = vmul.f32 %v434, %v303
    %437 = vset.pattern.permute.xlu0 44
    %438 = vperm.xlu0 %437, %v375
    %v439 = vpop.permute.xlu0 %438
    %v441 = vmul.f32 %v439, %v307
    %442 = vset.pattern.permute.xlu0 45
    %443 = vperm.xlu0 %442, %v375
    %v444 = vpop.permute.xlu0 %443
    %v446 = vmul.f32 %v444, %v311
    %447 = vset.pattern.permute.xlu0 46
    %448 = vperm.xlu0 %447, %v375
    %v449 = vpop.permute.xlu0 %448
    %v451 = vmul.f32 %v449, %v315
    %452 = vset.pattern.permute.xlu0 47
    %453 = vperm.xlu0 %452, %v375
    %v454 = vpop.permute.xlu0 %453
    %v456 = vmul.f32 %v454, %v319
    %v457 = vadd.f32 %v381, %v386
    %v458 = vadd.f32 %v391, %v396
    %v459 = vadd.f32 %v401, %v406
    %v460 = vadd.f32 %v411, %v416
    %v461 = vadd.f32 %v421, %v426
    %v462 = vadd.f32 %v431, %v436
    %v463 = vadd.f32 %v441, %v446
    %v464 = vadd.f32 %v451, %v456
    %v465 = vadd.f32 %v457, %v458
    %v466 = vadd.f32 %v459, %v460
    %v467 = vadd.f32 %v461, %v462
    %v468 = vadd.f32 %v463, %v464
    %v469 = vadd.f32 %v465, %v466
    %v470 = vadd.f32 %v467, %v468
    %v471 = vadd.f32 %v469, %v470
    %v472 = vadd.f32 %v247, %v471
    %v473 = vxor.u32 %v472, 2147483648
    %v474 = vmul.f32 %v473, 1.442695
    %v475 = vpow.pop %v474
    %v476 = vadd.f32 %v475, 1.0
    %v477 = vrcp.pop %v476
    %v478 = vmul.f32 1.0, %v477
    %v479 = vtanh.pop %v472
    %v480 = vmul.f32 %v478, %v369
    %482 = vrot.lane.b32.xlu0 %v479, 80
    %v483 = vpop.permute.xlu0 %482
    %v485 = vmul.f32 %v478, %v483
    %487 = vrot.lane.b32.xlu0 %v485, 16
    %v488 = vpop.permute.xlu0 %487
    %v490 = vadd.f32 %v480, %v488
    %v491 = vtanh.pop %v490
    %493 = vrot.lane.b32.xlu0 %v491, 16
    %v494 = vpop.permute.xlu0 %493
    %v496 = vmul.f32 %v478, %v494
    %498 = vset.pattern.permute.xlu0 32
    %499 = vperm.xlu0 %498, %v496
    %v500 = vpop.permute.xlu0 %499
    %v502 = vmul.f32 %v500, %v259
    %503 = vset.pattern.permute.xlu0 33
    %504 = vperm.xlu0 %503, %v496
    %v505 = vpop.permute.xlu0 %504
    %v507 = vmul.f32 %v505, %v263
    %508 = vset.pattern.permute.xlu0 34
    %509 = vperm.xlu0 %508, %v496
    %v510 = vpop.permute.xlu0 %509
    %v512 = vmul.f32 %v510, %v267
    %513 = vset.pattern.permute.xlu0 35
    %514 = vperm.xlu0 %513, %v496
    %v515 = vpop.permute.xlu0 %514
    %v517 = vmul.f32 %v515, %v271
    %518 = vset.pattern.permute.xlu0 36
    %519 = vperm.xlu0 %518, %v496
    %v520 = vpop.permute.xlu0 %519
    %v522 = vmul.f32 %v520, %v275
    %523 = vset.pattern.permute.xlu0 37
    %524 = vperm.xlu0 %523, %v496
    %v525 = vpop.permute.xlu0 %524
    %v527 = vmul.f32 %v525, %v279
    %528 = vset.pattern.permute.xlu0 38
    %529 = vperm.xlu0 %528, %v496
    %v530 = vpop.permute.xlu0 %529
    %v532 = vmul.f32 %v530, %v283
    %533 = vset.pattern.permute.xlu0 39
    %534 = vperm.xlu0 %533, %v496
    %v535 = vpop.permute.xlu0 %534
    %v537 = vmul.f32 %v535, %v287
    %538 = vset.pattern.permute.xlu0 40
    %539 = vperm.xlu0 %538, %v496
    %v540 = vpop.permute.xlu0 %539
    %v542 = vmul.f32 %v540, %v291
    %543 = vset.pattern.permute.xlu0 41
    %544 = vperm.xlu0 %543, %v496
    %v545 = vpop.permute.xlu0 %544
    %v547 = vmul.f32 %v545, %v295
    %548 = vset.pattern.permute.xlu0 42
    %549 = vperm.xlu0 %548, %v496
    %v550 = vpop.permute.xlu0 %549
    %v552 = vmul.f32 %v550, %v299
    %553 = vset.pattern.permute.xlu0 43
    %554 = vperm.xlu0 %553, %v496
    %v555 = vpop.permute.xlu0 %554
    %v557 = vmul.f32 %v555, %v303
    %558 = vset.pattern.permute.xlu0 44
    %559 = vperm.xlu0 %558, %v496
    %v560 = vpop.permute.xlu0 %559
    %v562 = vmul.f32 %v560, %v307
    %563 = vset.pattern.permute.xlu0 45
    %564 = vperm.xlu0 %563, %v496
    %v565 = vpop.permute.xlu0 %564
    %v567 = vmul.f32 %v565, %v311
    %568 = vset.pattern.permute.xlu0 46
    %569 = vperm.xlu0 %568, %v496
    %v570 = vpop.permute.xlu0 %569
    %v572 = vmul.f32 %v570, %v315
    %573 = vset.pattern.permute.xlu0 47
    %574 = vperm.xlu0 %573, %v496
    %v575 = vpop.permute.xlu0 %574
    %v577 = vmul.f32 %v575, %v319
    %v578 = vadd.f32 %v502, %v507
    %v579 = vadd.f32 %v512, %v517
    %v580 = vadd.f32 %v522, %v527
    %v581 = vadd.f32 %v532, %v537
    %v582 = vadd.f32 %v542, %v547
    %v583 = vadd.f32 %v552, %v557
    %v584 = vadd.f32 %v562, %v567
    %v585 = vadd.f32 %v572, %v577
    %v586 = vadd.f32 %v578, %v579
    %v587 = vadd.f32 %v580, %v581
    %v588 = vadd.f32 %v582, %v583
    %v589 = vadd.f32 %v584, %v585
    %v590 = vadd.f32 %v586, %v587
    %v591 = vadd.f32 %v588, %v589
    %v592 = vadd.f32 %v590, %v591
    %v593 = vadd.f32 %v248, %v592
    %v594 = vxor.u32 %v593, 2147483648
    %v595 = vmul.f32 %v594, 1.442695
    %v596 = vpow.pop %v595
    %v597 = vadd.f32 %v596, 1.0
    %v598 = vrcp.pop %v597
    %v599 = vmul.f32 1.0, %v598
    %v600 = vtanh.pop %v593
    %v601 = vmul.f32 %v599, %v490
    %603 = vrot.lane.b32.xlu0 %v600, 80
    %v604 = vpop.permute.xlu0 %603
    %v606 = vmul.f32 %v599, %v604
    %608 = vrot.lane.b32.xlu0 %v606, 16
    %v609 = vpop.permute.xlu0 %608
    %v611 = vadd.f32 %v601, %v609
    %v612 = vtanh.pop %v611
    %614 = vrot.lane.b32.xlu0 %v612, 16
    %v615 = vpop.permute.xlu0 %614
    %v617 = vmul.f32 %v599, %v615
    %619 = vset.pattern.permute.xlu0 32
    %620 = vperm.xlu0 %619, %v617
    %v621 = vpop.permute.xlu0 %620
    %v623 = vmul.f32 %v621, %v259
    %624 = vset.pattern.permute.xlu0 33
    %625 = vperm.xlu0 %624, %v617
    %v626 = vpop.permute.xlu0 %625
    %v628 = vmul.f32 %v626, %v263
    %629 = vset.pattern.permute.xlu0 34
    %630 = vperm.xlu0 %629, %v617
    %v631 = vpop.permute.xlu0 %630
    %v633 = vmul.f32 %v631, %v267
    %634 = vset.pattern.permute.xlu0 35
    %635 = vperm.xlu0 %634, %v617
    %v636 = vpop.permute.xlu0 %635
    %v638 = vmul.f32 %v636, %v271
    %639 = vset.pattern.permute.xlu0 36
    %640 = vperm.xlu0 %639, %v617
    %v641 = vpop.permute.xlu0 %640
    %v643 = vmul.f32 %v641, %v275
    %644 = vset.pattern.permute.xlu0 37
    %645 = vperm.xlu0 %644, %v617
    %v646 = vpop.permute.xlu0 %645
    %v648 = vmul.f32 %v646, %v279
    %649 = vset.pattern.permute.xlu0 38
    %650 = vperm.xlu0 %649, %v617
    %v651 = vpop.permute.xlu0 %650
    %v653 = vmul.f32 %v651, %v283
    %654 = vset.pattern.permute.xlu0 39
    %655 = vperm.xlu0 %654, %v617
    %v656 = vpop.permute.xlu0 %655
    %v658 = vmul.f32 %v656, %v287
    %659 = vset.pattern.permute.xlu0 40
    %660 = vperm.xlu0 %659, %v617
    %v661 = vpop.permute.xlu0 %660
    %v663 = vmul.f32 %v661, %v291
    %664 = vset.pattern.permute.xlu0 41
    %665 = vperm.xlu0 %664, %v617
    %v666 = vpop.permute.xlu0 %665
    %v668 = vmul.f32 %v666, %v295
    %669 = vset.pattern.permute.xlu0 42
    %670 = vperm.xlu0 %669, %v617
    %v671 = vpop.permute.xlu0 %670
    %v673 = vmul.f32 %v671, %v299
    %674 = vset.pattern.permute.xlu0 43
    %675 = vperm.xlu0 %674, %v617
    %v676 = vpop.permute.xlu0 %675
    %v678 = vmul.f32 %v676, %v303
    %679 = vset.pattern.permute.xlu0 44
    %680 = vperm.xlu0 %679, %v617
    %v681 = vpop.permute.xlu0 %680
    %v683 = vmul.f32 %v681, %v307
    %684 = vset.pattern.permute.xlu0 45
    %685 = vperm.xlu0 %684, %v617
    %v686 = vpop.permute.xlu0 %685
    %v688 = vmul.f32 %v686, %v311
    %689 = vset.pattern.permute.xlu0 46
    %690 = vperm.xlu0 %689, %v617
    %v691 = vpop.permute.xlu0 %690
    %v693 = vmul.f32 %v691, %v315
    %694 = vset.pattern.permute.xlu0 47
    %695 = vperm.xlu0 %694, %v617
    %v696 = vpop.permute.xlu0 %695
    %v698 = vmul.f32 %v696, %v319
    %v699 = vadd.f32 %v623, %v628
    %v700 = vadd.f32 %v633, %v638
    %v701 = vadd.f32 %v643, %v648
    %v702 = vadd.f32 %v653, %v658
    %v703 = vadd.f32 %v663, %v668
    %v704 = vadd.f32 %v673, %v678
    %v705 = vadd.f32 %v683, %v688
    %v706 = vadd.f32 %v693, %v698
    %v707 = vadd.f32 %v699, %v700
    %v708 = vadd.f32 %v701, %v702
    %v709 = vadd.f32 %v703, %v704
    %v710 = vadd.f32 %v705, %v706
    %v711 = vadd.f32 %v707, %v708
    %v712 = vadd.f32 %v709, %v710
    %v713 = vadd.f32 %v711, %v712
    %v714 = vadd.f32 %v249, %v713
    %v715 = vxor.u32 %v714, 2147483648
    %v716 = vmul.f32 %v715, 1.442695
    %v717 = vpow.pop %v716
    %v718 = vadd.f32 %v717, 1.0
    %v719 = vrcp.pop %v718
    %v720 = vmul.f32 1.0, %v719
    %v721 = vtanh.pop %v714
    %v722 = vmul.f32 %v720, %v611
    %724 = vrot.lane.b32.xlu0 %v721, 80
    %v725 = vpop.permute.xlu0 %724
    %v727 = vmul.f32 %v720, %v725
    %729 = vrot.lane.b32.xlu0 %v727, 16
    %v730 = vpop.permute.xlu0 %729
    %v732 = vadd.f32 %v722, %v730
    %v733 = vtanh.pop %v732
    %735 = vrot.lane.b32.xlu0 %v733, 16
    %v736 = vpop.permute.xlu0 %735
    %v738 = vmul.f32 %v720, %v736
    %740 = vset.pattern.permute.xlu0 32
    %741 = vperm.xlu0 %740, %v738
    %v742 = vpop.permute.xlu0 %741
    %v744 = vmul.f32 %v742, %v259
    %745 = vset.pattern.permute.xlu0 33
    %746 = vperm.xlu0 %745, %v738
    %v747 = vpop.permute.xlu0 %746
    %v749 = vmul.f32 %v747, %v263
    %750 = vset.pattern.permute.xlu0 34
    %751 = vperm.xlu0 %750, %v738
    %v752 = vpop.permute.xlu0 %751
    %v754 = vmul.f32 %v752, %v267
    %755 = vset.pattern.permute.xlu0 35
    %756 = vperm.xlu0 %755, %v738
    %v757 = vpop.permute.xlu0 %756
    %v759 = vmul.f32 %v757, %v271
    %760 = vset.pattern.permute.xlu0 36
    %761 = vperm.xlu0 %760, %v738
    %v762 = vpop.permute.xlu0 %761
    %v764 = vmul.f32 %v762, %v275
    %765 = vset.pattern.permute.xlu0 37
    %766 = vperm.xlu0 %765, %v738
    %v767 = vpop.permute.xlu0 %766
    %v769 = vmul.f32 %v767, %v279
    %770 = vset.pattern.permute.xlu0 38
    %771 = vperm.xlu0 %770, %v738
    %v772 = vpop.permute.xlu0 %771
    %v774 = vmul.f32 %v772, %v283
    %775 = vset.pattern.permute.xlu0 39
    %776 = vperm.xlu0 %775, %v738
    %v777 = vpop.permute.xlu0 %776
    %v779 = vmul.f32 %v777, %v287
    %780 = vset.pattern.permute.xlu0 40
    %781 = vperm.xlu0 %780, %v738
    %v782 = vpop.permute.xlu0 %781
    %v784 = vmul.f32 %v782, %v291
    %785 = vset.pattern.permute.xlu0 41
    %786 = vperm.xlu0 %785, %v738
    %v787 = vpop.permute.xlu0 %786
    %v789 = vmul.f32 %v787, %v295
    %790 = vset.pattern.permute.xlu0 42
    %791 = vperm.xlu0 %790, %v738
    %v792 = vpop.permute.xlu0 %791
    %v794 = vmul.f32 %v792, %v299
    %795 = vset.pattern.permute.xlu0 43
    %796 = vperm.xlu0 %795, %v738
    %v797 = vpop.permute.xlu0 %796
    %v799 = vmul.f32 %v797, %v303
    %800 = vset.pattern.permute.xlu0 44
    %801 = vperm.xlu0 %800, %v738
    %v802 = vpop.permute.xlu0 %801
    %v804 = vmul.f32 %v802, %v307
    %805 = vset.pattern.permute.xlu0 45
    %806 = vperm.xlu0 %805, %v738
    %v807 = vpop.permute.xlu0 %806
    %v809 = vmul.f32 %v807, %v311
    %810 = vset.pattern.permute.xlu0 46
    %811 = vperm.xlu0 %810, %v738
    %v812 = vpop.permute.xlu0 %811
    %v814 = vmul.f32 %v812, %v315
    %815 = vset.pattern.permute.xlu0 47
    %816 = vperm.xlu0 %815, %v738
    %v817 = vpop.permute.xlu0 %816
    %v819 = vmul.f32 %v817, %v319
    %v820 = vadd.f32 %v744, %v749
    %v821 = vadd.f32 %v754, %v759
    %v822 = vadd.f32 %v764, %v769
    %v823 = vadd.f32 %v774, %v779
    %v824 = vadd.f32 %v784, %v789
    %v825 = vadd.f32 %v794, %v799
    %v826 = vadd.f32 %v804, %v809
    %v827 = vadd.f32 %v814, %v819
    %v828 = vadd.f32 %v820, %v821
    %v829 = vadd.f32 %v822, %v823
    %v830 = vadd.f32 %v824, %v825
    %v831 = vadd.f32 %v826, %v827
    %v832 = vadd.f32 %v828, %v829
    %v833 = vadd.f32 %v830, %v831
    %v834 = vadd.f32 %v832, %v833
    %v835 = vadd.f32 %v250, %v834
    %v836 = vxor.u32 %v835, 2147483648
    %v837 = vmul.f32 %v836, 1.442695
    %v838 = vpow.pop %v837
    %v839 = vadd.f32 %v838, 1.0
    %v840 = vrcp.pop %v839
    %v841 = vmul.f32 1.0, %v840
    %v842 = vtanh.pop %v835
    %v843 = vmul.f32 %v841, %v732
    %845 = vrot.lane.b32.xlu0 %v842, 80
    %v846 = vpop.permute.xlu0 %845
    %v848 = vmul.f32 %v841, %v846
    %850 = vrot.lane.b32.xlu0 %v848, 16
    %v851 = vpop.permute.xlu0 %850
    %v853 = vadd.f32 %v843, %v851
    %v854 = vtanh.pop %v853
    %856 = vrot.lane.b32.xlu0 %v854, 16
    %v857 = vpop.permute.xlu0 %856
    %v859 = vmul.f32 %v841, %v857
    %861 = vset.pattern.permute.xlu0 32
    %862 = vperm.xlu0 %861, %v859
    %v863 = vpop.permute.xlu0 %862
    %v865 = vmul.f32 %v863, %v259
    %866 = vset.pattern.permute.xlu0 33
    %867 = vperm.xlu0 %866, %v859
    %v868 = vpop.permute.xlu0 %867
    %v870 = vmul.f32 %v868, %v263
    %871 = vset.pattern.permute.xlu0 34
    %872 = vperm.xlu0 %871, %v859
    %v873 = vpop.permute.xlu0 %872
    %v875 = vmul.f32 %v873, %v267
    %876 = vset.pattern.permute.xlu0 35
    %877 = vperm.xlu0 %876, %v859
    %v878 = vpop.permute.xlu0 %877
    %v880 = vmul.f32 %v878, %v271
    %881 = vset.pattern.permute.xlu0 36
    %882 = vperm.xlu0 %881, %v859
    %v883 = vpop.permute.xlu0 %882
    %v885 = vmul.f32 %v883, %v275
    %886 = vset.pattern.permute.xlu0 37
    %887 = vperm.xlu0 %886, %v859
    %v888 = vpop.permute.xlu0 %887
    %v890 = vmul.f32 %v888, %v279
    %891 = vset.pattern.permute.xlu0 38
    %892 = vperm.xlu0 %891, %v859
    %v893 = vpop.permute.xlu0 %892
    %v895 = vmul.f32 %v893, %v283
    %896 = vset.pattern.permute.xlu0 39
    %897 = vperm.xlu0 %896, %v859
    %v898 = vpop.permute.xlu0 %897
    %v900 = vmul.f32 %v898, %v287
    %901 = vset.pattern.permute.xlu0 40
    %902 = vperm.xlu0 %901, %v859
    %v903 = vpop.permute.xlu0 %902
    %v905 = vmul.f32 %v903, %v291
    %906 = vset.pattern.permute.xlu0 41
    %907 = vperm.xlu0 %906, %v859
    %v908 = vpop.permute.xlu0 %907
    %v910 = vmul.f32 %v908, %v295
    %911 = vset.pattern.permute.xlu0 42
    %912 = vperm.xlu0 %911, %v859
    %v913 = vpop.permute.xlu0 %912
    %v915 = vmul.f32 %v913, %v299
    %916 = vset.pattern.permute.xlu0 43
    %917 = vperm.xlu0 %916, %v859
    %v918 = vpop.permute.xlu0 %917
    %v920 = vmul.f32 %v918, %v303
    %921 = vset.pattern.permute.xlu0 44
    %922 = vperm.xlu0 %921, %v859
    %v923 = vpop.permute.xlu0 %922
    %v925 = vmul.f32 %v923, %v307
    %926 = vset.pattern.permute.xlu0 45
    %927 = vperm.xlu0 %926, %v859
    %v928 = vpop.permute.xlu0 %927
    %v930 = vmul.f32 %v928, %v311
    %931 = vset.pattern.permute.xlu0 46
    %932 = vperm.xlu0 %931, %v859
    %v933 = vpop.permute.xlu0 %932
    %v935 = vmul.f32 %v933, %v315
    %936 = vset.pattern.permute.xlu0 47
    %937 = vperm.xlu0 %936, %v859
    %v938 = vpop.permute.xlu0 %937
    %v940 = vmul.f32 %v938, %v319
    %v941 = vadd.f32 %v865, %v870
    %v942 = vadd.f32 %v875, %v880
    %v943 = vadd.f32 %v885, %v890
    %v944 = vadd.f32 %v895, %v900
    %v945 = vadd.f32 %v905, %v910
    %v946 = vadd.f32 %v915, %v920
    %v947 = vadd.f32 %v925, %v930
    %v948 = vadd.f32 %v935, %v940
    %v949 = vadd.f32 %v941, %v942
    %v950 = vadd.f32 %v943, %v944
    %v951 = vadd.f32 %v945, %v946
    %v952 = vadd.f32 %v947, %v948
    %v953 = vadd.f32 %v949, %v950
    %v954 = vadd.f32 %v951, %v952
    %v955 = vadd.f32 %v953, %v954
    %v956 = vadd.f32 %v251, %v955
    %v957 = vxor.u32 %v956, 2147483648
    %v958 = vmul.f32 %v957, 1.442695
    %v959 = vpow.pop %v958
    %v960 = vadd.f32 %v959, 1.0
    %v961 = vrcp.pop %v960
    %v962 = vmul.f32 1.0, %v961
    %v963 = vtanh.pop %v956
    %v964 = vmul.f32 %v962, %v853
    %966 = vrot.lane.b32.xlu0 %v963, 80
    %v967 = vpop.permute.xlu0 %966
    %v969 = vmul.f32 %v962, %v967
    %971 = vrot.lane.b32.xlu0 %v969, 16
    %v972 = vpop.permute.xlu0 %971
    %v974 = vadd.f32 %v964, %v972
    %v975 = vtanh.pop %v974
    %977 = vrot.lane.b32.xlu0 %v975, 16
    %v978 = vpop.permute.xlu0 %977
    %v980 = vmul.f32 %v962, %v978
    %982 = vset.pattern.permute.xlu0 32
    %983 = vperm.xlu0 %982, %v980
    %v984 = vpop.permute.xlu0 %983
    %v986 = vmul.f32 %v984, %v259
    %987 = vset.pattern.permute.xlu0 33
    %988 = vperm.xlu0 %987, %v980
    %v989 = vpop.permute.xlu0 %988
    %v991 = vmul.f32 %v989, %v263
    %992 = vset.pattern.permute.xlu0 34
    %993 = vperm.xlu0 %992, %v980
    %v994 = vpop.permute.xlu0 %993
    %v996 = vmul.f32 %v994, %v267
    %997 = vset.pattern.permute.xlu0 35
    %998 = vperm.xlu0 %997, %v980
    %v999 = vpop.permute.xlu0 %998
    %v1001 = vmul.f32 %v999, %v271
    %1002 = vset.pattern.permute.xlu0 36
    %1003 = vperm.xlu0 %1002, %v980
    %v1004 = vpop.permute.xlu0 %1003
    %v1006 = vmul.f32 %v1004, %v275
    %1007 = vset.pattern.permute.xlu0 37
    %1008 = vperm.xlu0 %1007, %v980
    %v1009 = vpop.permute.xlu0 %1008
    %v1011 = vmul.f32 %v1009, %v279
    %1012 = vset.pattern.permute.xlu0 38
    %1013 = vperm.xlu0 %1012, %v980
    %v1014 = vpop.permute.xlu0 %1013
    %v1016 = vmul.f32 %v1014, %v283
    %1017 = vset.pattern.permute.xlu0 39
    %1018 = vperm.xlu0 %1017, %v980
    %v1019 = vpop.permute.xlu0 %1018
    %v1021 = vmul.f32 %v1019, %v287
    %1022 = vset.pattern.permute.xlu0 40
    %1023 = vperm.xlu0 %1022, %v980
    %v1024 = vpop.permute.xlu0 %1023
    %v1026 = vmul.f32 %v1024, %v291
    %1027 = vset.pattern.permute.xlu0 41
    %1028 = vperm.xlu0 %1027, %v980
    %v1029 = vpop.permute.xlu0 %1028
    %v1031 = vmul.f32 %v1029, %v295
    %1032 = vset.pattern.permute.xlu0 42
    %1033 = vperm.xlu0 %1032, %v980
    %v1034 = vpop.permute.xlu0 %1033
    %v1036 = vmul.f32 %v1034, %v299
    %1037 = vset.pattern.permute.xlu0 43
    %1038 = vperm.xlu0 %1037, %v980
    %v1039 = vpop.permute.xlu0 %1038
    %v1041 = vmul.f32 %v1039, %v303
    %1042 = vset.pattern.permute.xlu0 44
    %1043 = vperm.xlu0 %1042, %v980
    %v1044 = vpop.permute.xlu0 %1043
    %v1046 = vmul.f32 %v1044, %v307
    %1047 = vset.pattern.permute.xlu0 45
    %1048 = vperm.xlu0 %1047, %v980
    %v1049 = vpop.permute.xlu0 %1048
    %v1051 = vmul.f32 %v1049, %v311
    %1052 = vset.pattern.permute.xlu0 46
    %1053 = vperm.xlu0 %1052, %v980
    %v1054 = vpop.permute.xlu0 %1053
    %v1056 = vmul.f32 %v1054, %v315
    %1057 = vset.pattern.permute.xlu0 47
    %1058 = vperm.xlu0 %1057, %v980
    %v1059 = vpop.permute.xlu0 %1058
    %v1061 = vmul.f32 %v1059, %v319
    %v1062 = vadd.f32 %v986, %v991
    %v1063 = vadd.f32 %v996, %v1001
    %v1064 = vadd.f32 %v1006, %v1011
    %v1065 = vadd.f32 %v1016, %v1021
    %v1066 = vadd.f32 %v1026, %v1031
    %v1067 = vadd.f32 %v1036, %v1041
    %v1068 = vadd.f32 %v1046, %v1051
    %v1069 = vadd.f32 %v1056, %v1061
    %v1070 = vadd.f32 %v1062, %v1063
    %v1071 = vadd.f32 %v1064, %v1065
    %v1072 = vadd.f32 %v1066, %v1067
    %v1073 = vadd.f32 %v1068, %v1069
    %v1074 = vadd.f32 %v1070, %v1071
    %v1075 = vadd.f32 %v1072, %v1073
    %v1076 = vadd.f32 %v1074, %v1075
    %v1077 = vadd.f32 %v252, %v1076
    %v1078 = vxor.u32 %v1077, 2147483648
    %v1079 = vmul.f32 %v1078, 1.442695
    %v1080 = vpow.pop %v1079
    %v1081 = vadd.f32 %v1080, 1.0
    %v1082 = vrcp.pop %v1081
    %v1083 = vmul.f32 1.0, %v1082
    %v1084 = vtanh.pop %v1077
    %v1085 = vmul.f32 %v1083, %v974
    %1087 = vrot.lane.b32.xlu0 %v1084, 80
    %v1088 = vpop.permute.xlu0 %1087
    %v1090 = vmul.f32 %v1083, %v1088
    %1092 = vrot.lane.b32.xlu0 %v1090, 16
    %v1093 = vpop.permute.xlu0 %1092
    %v1095 = vadd.f32 %v1085, %v1093
    %v1096 = vtanh.pop %v1095
    %1098 = vrot.lane.b32.xlu0 %v1096, 16
    %v1099 = vpop.permute.xlu0 %1098
    %v1101 = vmul.f32 %v1083, %v1099
    %1103 = vset.pattern.permute.xlu0 32
    %1104 = vperm.xlu0 %1103, %v1101
    %v1105 = vpop.permute.xlu0 %1104
    %v1107 = vmul.f32 %v1105, %v259
    %1108 = vset.pattern.permute.xlu0 33
    %1109 = vperm.xlu0 %1108, %v1101
    %v1110 = vpop.permute.xlu0 %1109
    %v1112 = vmul.f32 %v1110, %v263
    %1113 = vset.pattern.permute.xlu0 34
    %1114 = vperm.xlu0 %1113, %v1101
    %v1115 = vpop.permute.xlu0 %1114
    %v1117 = vmul.f32 %v1115, %v267
    %1118 = vset.pattern.permute.xlu0 35
    %1119 = vperm.xlu0 %1118, %v1101
    %v1120 = vpop.permute.xlu0 %1119
    %v1122 = vmul.f32 %v1120, %v271
    %1123 = vset.pattern.permute.xlu0 36
    %1124 = vperm.xlu0 %1123, %v1101
    %v1125 = vpop.permute.xlu0 %1124
    %v1127 = vmul.f32 %v1125, %v275
    %1128 = vset.pattern.permute.xlu0 37
    %1129 = vperm.xlu0 %1128, %v1101
    %v1130 = vpop.permute.xlu0 %1129
    %v1132 = vmul.f32 %v1130, %v279
    %1133 = vset.pattern.permute.xlu0 38
    %1134 = vperm.xlu0 %1133, %v1101
    %v1135 = vpop.permute.xlu0 %1134
    %v1137 = vmul.f32 %v1135, %v283
    %1138 = vset.pattern.permute.xlu0 39
    %1139 = vperm.xlu0 %1138, %v1101
    %v1140 = vpop.permute.xlu0 %1139
    %v1142 = vmul.f32 %v1140, %v287
    %1143 = vset.pattern.permute.xlu0 40
    %1144 = vperm.xlu0 %1143, %v1101
    %v1145 = vpop.permute.xlu0 %1144
    %v1147 = vmul.f32 %v1145, %v291
    %1148 = vset.pattern.permute.xlu0 41
    %1149 = vperm.xlu0 %1148, %v1101
    %v1150 = vpop.permute.xlu0 %1149
    %v1152 = vmul.f32 %v1150, %v295
    %1153 = vset.pattern.permute.xlu0 42
    %1154 = vperm.xlu0 %1153, %v1101
    %v1155 = vpop.permute.xlu0 %1154
    %v1157 = vmul.f32 %v1155, %v299
    %1158 = vset.pattern.permute.xlu0 43
    %1159 = vperm.xlu0 %1158, %v1101
    %v1160 = vpop.permute.xlu0 %1159
    %v1162 = vmul.f32 %v1160, %v303
    %1163 = vset.pattern.permute.xlu0 44
    %1164 = vperm.xlu0 %1163, %v1101
    %v1165 = vpop.permute.xlu0 %1164
    %v1167 = vmul.f32 %v1165, %v307
    %1168 = vset.pattern.permute.xlu0 45
    %1169 = vperm.xlu0 %1168, %v1101
    %v1170 = vpop.permute.xlu0 %1169
    %v1172 = vmul.f32 %v1170, %v311
    %1173 = vset.pattern.permute.xlu0 46
    %1174 = vperm.xlu0 %1173, %v1101
    %v1175 = vpop.permute.xlu0 %1174
    %v1177 = vmul.f32 %v1175, %v315
    %1178 = vset.pattern.permute.xlu0 47
    %1179 = vperm.xlu0 %1178, %v1101
    %v1180 = vpop.permute.xlu0 %1179
    %v1182 = vmul.f32 %v1180, %v319
    %v1183 = vadd.f32 %v1107, %v1112
    %v1184 = vadd.f32 %v1117, %v1122
    %v1185 = vadd.f32 %v1127, %v1132
    %v1186 = vadd.f32 %v1137, %v1142
    %v1187 = vadd.f32 %v1147, %v1152
    %v1188 = vadd.f32 %v1157, %v1162
    %v1189 = vadd.f32 %v1167, %v1172
    %v1190 = vadd.f32 %v1177, %v1182
    %v1191 = vadd.f32 %v1183, %v1184
    %v1192 = vadd.f32 %v1185, %v1186
    %v1193 = vadd.f32 %v1187, %v1188
    %v1194 = vadd.f32 %v1189, %v1190
    %v1195 = vadd.f32 %v1191, %v1192
    %v1196 = vadd.f32 %v1193, %v1194
    %v1197 = vadd.f32 %v1195, %v1196
    %v1198 = vadd.f32 %v253, %v1197
    %v1199 = vxor.u32 %v1198, 2147483648
    %v1200 = vmul.f32 %v1199, 1.442695
    %v1201 = vpow.pop %v1200
    %v1202 = vadd.f32 %v1201, 1.0
    %v1203 = vrcp.pop %v1202
    %v1204 = vmul.f32 1.0, %v1203
    %v1205 = vtanh.pop %v1198
    %v1206 = vmul.f32 %v1204, %v1095
    %1208 = vrot.lane.b32.xlu0 %v1205, 80
    %v1209 = vpop.permute.xlu0 %1208
    %v1211 = vmul.f32 %v1204, %v1209
    %1213 = vrot.lane.b32.xlu0 %v1211, 16
    %v1214 = vpop.permute.xlu0 %1213
    %v1216 = vadd.f32 %v1206, %v1214
    %v1217 = vtanh.pop %v1216
    %1219 = vrot.lane.b32.xlu0 %v1217, 16
    %v1220 = vpop.permute.xlu0 %1219
    %v1222 = vmul.f32 %v1204, %v1220
    %v1223 = vld [vmem:[%s3 + $0x28] sm:$0x1]
    %v1224 = vld [vmem:[%s3] sm:$0xff]
    %v1225 = vld [vmem:[%s3 + $0x8] sm:$0xff]
    %v1226 = vld [vmem:[%s3 + $0x10] sm:$0xff]
    %v1227 = vld [vmem:[%s3 + $0x18] sm:$0xff]
    %v1228 = vld [vmem:[%s3 + $0x20] sm:$0xff]
    %1230 = vrot.lane.b32.xlu0 %v1222, 96
    %v1231 = vpop.permute.xlu0 %1230
    %vm1232 = vcmask 130048
    %v1233 = vsel %vm1232, %v1231, 0
    %1235 = vmatprep.subr.mxu0 0.0
    %1236 = vmatpush1.msra.mxu0 %v1227
    %1237 = vmatprep.subr.mxu0 0.0
    %1238 = vmatpush1.msra.mxu0 %v1228
    %1239 = vmatprep.subr.mxu0 0.0
    %1240 = vmatpush1.msra.mxu0 0.0
    %1241 = vmatprep.subr.mxu0 0.0
    %1242 = vmatpush1.msra.mxu0 0.0
    %1243 = vmatprep.subr.mxu0 0.0
    %1244 = vmatpush1.msra.mxu0 0.0
    %1245 = vmatprep.subr.mxu0 0.0
    %1246 = vmatpush1.msra.mxu0 0.0
    %1247 = vmatprep.subr.mxu0 0.0
    %1248 = vmatpush1.msra.mxu0 0.0
    %1249 = vmatprep.subr.mxu0 0.0
    %1250 = vmatpush1.msra.mxu0 0.0
    %1251 = vmatprep.subr.mxu0 0.0
    %1252 = vmatpush1.msra.mxu0 0.0
    %1253 = vmatprep.subr.mxu0 0.0
    %1254 = vmatpush1.msra.mxu0 0.0
    %1255 = vmatprep.subr.mxu0 0.0
    %1256 = vmatpush1.msra.mxu0 0.0
    %1257 = vmatprep.subr.mxu0 0.0
    %1258 = vmatpush1.msra.mxu0 0.0
    %1259 = vmatprep.subr.mxu0 0.0
    %1260 = vmatpush1.msra.mxu0 0.0
    %1261 = vmatprep.subr.mxu0 0.0
    %1262 = vmatpush1.msra.mxu0 0.0
    %1263 = vmatprep.subr.mxu0 0.0
    %1264 = vmatpush1.msra.mxu0 0.0
    %1265 = vmatprep.subr.mxu0 0.0
    %1266 = vmatpush1.msra.mxu0 0.0
    %1267 = vmatprep.subr.mxu0 0.0
    %1268 = vmatpush1.msra.mxu0 0.0
    %1269 = vmatprep.subr.mxu0 0.0
    %1270 = vmatpush1.msra.mxu0 0.0
    %1271 = vmatprep.subr.mxu0 0.0
    %1272 = vmatpush1.msra.mxu0 0.0
    %1273 = vmatprep.subr.mxu0 0.0
    %1274 = vmatpush1.msra.mxu0 0.0
    %1275 = vmatprep.subr.mxu0 0.0
    %1276 = vmatpush1.msra.mxu0 0.0
    %1277 = vmatprep.subr.mxu0 0.0
    %1278 = vmatpush1.msra.mxu0 0.0
    %1279 = vmatprep.subr.mxu0 0.0
    %1280 = vmatpush1.msra.mxu0 0.0
    %1281 = vmatprep.subr.mxu0 0.0
    %1282 = vmatpush1.msra.mxu0 0.0
    %1283 = vmatprep.subr.mxu0 0.0
    %1284 = vmatpush1.msra.mxu0 0.0
    %1285 = vmatprep.subr.mxu0 0.0
    %1286 = vmatpush1.msra.mxu0 0.0
    %1287 = vmatprep.subr.mxu0 0.0
    %1288 = vmatpush1.msra.mxu0 0.0
    %1289 = vmatprep.subr.mxu0 0.0
    %1290 = vmatpush1.msra.mxu0 0.0
    %1291 = vmatprep.subr.mxu0 0.0
    %1292 = vmatpush1.msra.mxu0 0.0
    %1293 = vmatprep.subr.mxu0 0.0
    %1294 = vmatpush1.msra.mxu0 0.0
    %1295 = vmatprep.subr.mxu0 0.0
    %1296 = vmatpush1.msra.mxu0 0.0
    %1297 = vmatprep.subr.mxu0 0.0
    %1298 = vmatpush1.msra.mxu0 0.0
    %1299 = vmatprep.mubr.f32.mxu0 0.0
    %1300 = vmatmul.mubr.f32.gmra.mrb[0].mxu0 %v1233
    %v1301 = vpop.f32.mrb[0].mxu0
    %v1302 = vadd.f32 0.0, %v1301
    %v1303 = vpop.f32.mrb[0].mxu0
    %1304 = vdwg.mxu0
    %vm1307 = vcmask 1041409
    %v1308 = vsel %vm1307, %v179, %v170
    %v1309 = vsel %vm161, %v1308, 0
    %1311 = vmatprep.subr.mxu0 0.0
    %1312 = vmatpush1.msra.mxu0 %v1224
    %1313 = vmatprep.subr.mxu0 0.0
    %1314 = vmatpush1.msra.mxu0 %v1225
    %1315 = vmatprep.subr.mxu0 0.0
    %1316 = vmatpush1.msra.mxu0 %v1226
    %1317 = vmatprep.subr.mxu0 0.0
    %1318 = vmatpush1.msra.mxu0 0.0
    %1319 = vmatprep.subr.mxu0 0.0
    %1320 = vmatpush1.msra.mxu0 0.0
    %1321 = vmatprep.subr.mxu0 0.0
    %1322 = vmatpush1.msra.mxu0 0.0
    %1323 = vmatprep.subr.mxu0 0.0
    %1324 = vmatpush1.msra.mxu0 0.0
    %1325 = vmatprep.subr.mxu0 0.0
    %1326 = vmatpush1.msra.mxu0 0.0
    %1327 = vmatprep.subr.mxu0 0.0
    %1328 = vmatpush1.msra.mxu0 0.0
    %1329 = vmatprep.subr.mxu0 0.0
    %1330 = vmatpush1.msra.mxu0 0.0
    %1331 = vmatprep.subr.mxu0 0.0
    %1332 = vmatpush1.msra.mxu0 0.0
    %1333 = vmatprep.subr.mxu0 0.0
    %1334 = vmatpush1.msra.mxu0 0.0
    %1335 = vmatprep.subr.mxu0 0.0
    %1336 = vmatpush1.msra.mxu0 0.0
    %1337 = vmatprep.subr.mxu0 0.0
    %1338 = vmatpush1.msra.mxu0 0.0
    %1339 = vmatprep.subr.mxu0 0.0
    %1340 = vmatpush1.msra.mxu0 0.0
    %1341 = vmatprep.subr.mxu0 0.0
    %1342 = vmatpush1.msra.mxu0 0.0
    %1343 = vmatprep.subr.mxu0 0.0
    %1344 = vmatpush1.msra.mxu0 0.0
    %1345 = vmatprep.subr.mxu0 0.0
    %1346 = vmatpush1.msra.mxu0 0.0
    %1347 = vmatprep.subr.mxu0 0.0
    %1348 = vmatpush1.msra.mxu0 0.0
    %1349 = vmatprep.subr.mxu0 0.0
    %1350 = vmatpush1.msra.mxu0 0.0
    %1351 = vmatprep.subr.mxu0 0.0
    %1352 = vmatpush1.msra.mxu0 0.0
    %1353 = vmatprep.subr.mxu0 0.0
    %1354 = vmatpush1.msra.mxu0 0.0
    %1355 = vmatprep.subr.mxu0 0.0
    %1356 = vmatpush1.msra.mxu0 0.0
    %1357 = vmatprep.subr.mxu0 0.0
    %1358 = vmatpush1.msra.mxu0 0.0
    %1359 = vmatprep.subr.mxu0 0.0
    %1360 = vmatpush1.msra.mxu0 0.0
    %1361 = vmatprep.subr.mxu0 0.0
    %1362 = vmatpush1.msra.mxu0 0.0
    %1363 = vmatprep.subr.mxu0 0.0
    %1364 = vmatpush1.msra.mxu0 0.0
    %1365 = vmatprep.subr.mxu0 0.0
    %1366 = vmatpush1.msra.mxu0 0.0
    %1367 = vmatprep.subr.mxu0 0.0
    %1368 = vmatpush1.msra.mxu0 0.0
    %1369 = vmatprep.subr.mxu0 0.0
    %1370 = vmatpush1.msra.mxu0 0.0
    %1371 = vmatprep.subr.mxu0 0.0
    %1372 = vmatpush1.msra.mxu0 0.0
    %1373 = vmatprep.subr.mxu0 0.0
    %1374 = vmatpush1.msra.mxu0 0.0
    %1375 = vmatprep.mubr.f32.mxu0 0.0
    %1376 = vmatmul.mubr.f32.gmra.mrb[0].mxu0 %v1309
    %v1377 = vpop.f32.mrb[0].mxu0
    %v1378 = vadd.f32 %v1302, %v1377
    %v1379 = vpop.f32.mrb[0].mxu0
    %1380 = vdwg.mxu0
    %v1381 = vlaneseq
    %v1382 = vshrl.u32 %v1381, 7
    %v1383 = vsub.s32 0, %v1382
    %v1384 = vrot.slane %v1223, %v1383
    %v1385 = vadd.f32 %v1378, %v1384
    %vm1386 = vcmask 1041408
    %v1387 = vsel %vm1386, %v1385, -inf
    %1388 = vmax.xlane.f32.xlu0 %v1387
    %v1389 = vpop.xlane.xlu0 %1388
    %v1390 = vsub.f32 %v1385, %v1389
    %v1391 = vmul.f32 %v1390, 1.442695
    %v1392 = vpow.pop %v1391
    %v1393 = vsel %vm1386, %v1392, 0.0
    %1394 = vadd.xlane.f32.xlu0 %v1393
    %v1395 = vpop.xlane.xlu0 %1394
    %v1396 = vlog2.pop %v1395
    %v1397 = vmul.f32 %v1396, 0.6931472
    %v1398 = vadd.f32 %v1389, %v1397
    %v1399 = vsub.f32 %v1385, %v1398
    %1400 = vst [vmem:[#allocation2] sm:$0x3] %v1399
    // Predicated region
    $region18: #{_forward_impl.1} parent=1 // pred_check
      _
    $region19: #{_forward_impl.1} parent=1 // pred_check_branch
      %1402 = sbr.rel (0) target = $region21
    $region20: #{_forward_impl.1} parent=1 // pred_region
      %s1404 = ssub.s32 32, 32
      %1405 = vsyncadd [#allocation3], %s1404
      %s1407 = sshll.u32 [#allocation2], 4
      %s1408 = int_to_ptr.vmem [resolvable:$true] %s1407
      %1410 = dma.vmem_to_hbm [thread:$0]  %s1408, 32, %s4, [#allocation3]
    $region21: #{_forward_impl.1} parent=1 // pred_fallthru
      _
    // Predicated region
    $region22: #{_forward_impl.1} parent=1 // pred_check
      _
    $region23: #{_forward_impl.1} parent=1 // pred_check_branch
      %1412 = sbr.rel (0) target = $region25
    $region24: #{_forward_impl.1} parent=1 // pred_region
      %1413 = dma.done [#allocation3], 32
    $region25: #{_forward_impl.1} parent=1 // pred_fallthru
      _
    %1414 = vsyncpa [#allocation3], 1

</llo_original>
